<compile_context>
chip_gen: v6e
topology: v6e:2x2x1
jax: 0.10.0
libtpu: 0.0.40
codegen_flags: <defaults>
</compile_context>

<pallas_src>
import math

import jax
import jax.numpy as jnp
import numpy as np
from jax.experimental import pallas as pl
from jax.experimental.pallas import tpu as pltpu


def _make_attention_kernel(n_head: int, seq_len: int, mm_dtype):
    def kernel(x_ref, wqkv_ref, bqkv_ref, wp_ref, bp_ref, o_ref):
        rows, c = x_ref.shape           # rows = block_b * T
        t = seq_len
        bb = rows // t                  # batch rows handled this grid step
        hd = c // n_head

        # ---- fused q/k/v projection: one bf16 MXU pass, f32 accumulate -----
        x_bf = x_ref[...].astype(mm_dtype)                       # (rows, C)
        qkv = jnp.dot(x_bf, wqkv_ref[...],
                      preferred_element_type=jnp.float32)
        qkv = (qkv + bqkv_ref[...]).astype(mm_dtype)             # (rows, 3C) bf16
        # Note: the 1/sqrt(hd) attention scale is already folded into Wq / bq.

        # Single sublane-split reshape; every head below is a static lane slice.
        qkv3 = qkv.reshape(bb, t, 3 * c)                         # (bb, T, 3C)

        # ---- attention core: one batched 3-D einsum pair per head ----------
        ys = []
        for h in range(n_head):
            lo = h * hd
            q_h = qkv3[:, :, lo:lo + hd]                         # (bb, T, hd)
            k_h = qkv3[:, :, c + lo:c + lo + hd]                 # (bb, T, hd)
            v_h = qkv3[:, :, 2 * c + lo:2 * c + lo + hd]         # (bb, T, hd)

            s = jnp.einsum("bqd,bkd->bqk", q_h, k_h,
                           preferred_element_type=jnp.float32)   # (bb, T, T) f32
            s_max = jnp.max(s, axis=-1, keepdims=True)
            p = jnp.exp(s - s_max)                               # f32
            denom = jnp.sum(p, axis=-1, keepdims=True)           # (bb, T, 1)

            y_h = jnp.einsum("bqk,bkd->bqd", p.astype(mm_dtype), v_h,
                             preferred_element_type=jnp.float32) # (bb, T, hd)
            # Deferred softmax normalisation (EUP reciprocal overlaps the
            # PV matmul; scales (T, hd) instead of (T, T)).
            ys.append(y_h * pl.reciprocal(denom, approx=True))

        y = jnp.concatenate(ys, axis=-1)                         # (bb, T, C) f32
        y2 = y.reshape(rows, c).astype(mm_dtype)

        # ---- output projection ---------------------------------------------
        out = jnp.dot(y2, wp_ref[...],
                      preferred_element_type=jnp.float32) + bp_ref[...]
        o_ref[...] = out.astype(o_ref.dtype)

    return kernel


def pack_params(params, n_head, mm_dtype=jnp.bfloat16):
    """Fuse q/k/v weights, bake the attention scale into Wq/bq, cast weights
    to the MXU input dtype (biases stay f32 — added post-accumulation)."""
    c = params["wq"].shape[0]
    hd = c // n_head
    scale = 1.0 / math.sqrt(hd)
    wqkv = jnp.concatenate([params["wq"] * scale, params["wk"], params["wv"]],
                           axis=1)                               # (C, 3C)
    bqkv = jnp.concatenate([params["bq"] * scale, params["bk"], params["bv"]],
                           axis=1)                               # (1, 3C)
    return {
        "wqkv": wqkv.astype(mm_dtype),
        "bqkv": bqkv.astype(jnp.float32),
        "wp": params["wp"].astype(mm_dtype),
        "bp": params["bp"].astype(jnp.float32),
    }


def _pick_block_b(b, t, target_rows=256):
    """Largest divisor of b with block_b * t <= target_rows (MXU row occupancy,
    fewer grid steps), while keeping the parallel grid axis at extent >= 2
    whenever b >= 2 so v7x's second TensorCore gets a share of the work."""
    cap = max(1, target_rows // t)
    if b >= 2:
        cap = min(cap, b // 2)
    best = 1
    for d in range(1, min(b, cap) + 1):
        if b % d == 0:
            best = d
    return best


def self_attention_pallas(x, packed, n_head, *, block_b=None,
                          mm_dtype=jnp.bfloat16,
                          vmem_limit_bytes=32 * 1024 * 1024):
    """x: (B, T, C) float32. packed: output of pack_params()."""
    b, t, c = x.shape
    assert c % n_head == 0
    if block_b is None:
        block_b = _pick_block_b(b, t)
    assert b % block_b == 0

    wqkv, bqkv, wp, bp = packed["wqkv"], packed["bqkv"], packed["wp"], packed["bp"]

    x2 = x.reshape(b * t, c)                 # wrapper-side reshape: free in XLA
    rows_blk = block_b * t

    def const_spec(shape, single_buffer):
        # Weight/bias blocks never change with the grid index; single-buffer
        # them when the API allows it (halves their VMEM footprint for free).
        idx = lambda i: (0, 0)
        if single_buffer and hasattr(pl, "Buffered"):
            try:
                return pl.BlockSpec(shape, idx, pipeline_mode=pl.Buffered(1))
            except TypeError:            # BlockSpec without pipeline_mode kwarg
                pass
        return pl.BlockSpec(shape, idx)

    def build(single_buffer_weights):
        return pl.pallas_call(
            _make_attention_kernel(n_head, t, mm_dtype),
            out_shape=jax.ShapeDtypeStruct((b * t, c), x.dtype),
            grid_spec=pltpu.PrefetchScalarGridSpec(
                num_scalar_prefetch=0,
                grid=(b // block_b,),
                in_specs=[
                    pl.BlockSpec((rows_blk, c), lambda i: (i, 0)),     # x slab
                    const_spec((c, 3 * c), single_buffer_weights),     # Wqkv
                    const_spec((1, 3 * c), single_buffer_weights),     # bqkv
                    const_spec((c, c), single_buffer_weights),         # Wproj
                    const_spec((1, c), single_buffer_weights),         # bproj
                ],
                out_specs=pl.BlockSpec((rows_blk, c), lambda i: (i, 0)),
            ),
            compiler_params=pltpu.CompilerParams(
                dimension_semantics=("parallel",),
                vmem_limit_bytes=vmem_limit_bytes,
            ),
        )

    try:
        out2 = build(True)(x2, wqkv, bqkv, wp, bp)
    except Exception:
        # Fallback: default double-buffered weights (a few KiB extra VMEM here).
        out2 = build(False)(x2, wqkv, bqkv, wp, bp)
    return out2.reshape(b, t, c)


def _reference(x, params, n_head, mm_dtype=jnp.bfloat16):
    """Pure-JAX reference mirroring the PyTorch forward (dropout = identity).
    Matmuls mirror the kernel's bf16-input / f32-accumulate MXU precision so
    the comparison is apples-to-apples."""
    b, t, c = x.shape
    hd = c // n_head

    def mm(a, w):
        return jnp.dot(a.astype(mm_dtype), w.astype(mm_dtype),
                       preferred_element_type=jnp.float32)

    x2 = x.reshape(b * t, c)
    q = (mm(x2, params["wq"]) + params["bq"]).reshape(b, t, n_head, hd)
    k = (mm(x2, params["wk"]) + params["bk"]).reshape(b, t, n_head, hd)
    v = (mm(x2, params["wv"]) + params["bv"]).reshape(b, t, n_head, hd)
    q = q.transpose(0, 2, 1, 3)
    k = k.transpose(0, 2, 1, 3)
    v = v.transpose(0, 2, 1, 3)
    att = jnp.einsum("bhqd,bhkd->bhqk", q.astype(mm_dtype), k.astype(mm_dtype),
                     preferred_element_type=jnp.float32) * (1.0 / math.sqrt(hd))
    att = jax.nn.softmax(att, axis=-1)
    y = jnp.einsum("bhqk,bhkd->bhqd", att.astype(mm_dtype), v.astype(mm_dtype),
                   preferred_element_type=jnp.float32)
    y = y.transpose(0, 2, 1, 3).reshape(b * t, c)
    return (mm(y, params["wp"]) + params["bp"]).reshape(b, t, c)


def _init_params(key, n_embd):
    """Deterministic init mimicking nn.Linear (uniform +-1/sqrt(fan_in)).
    Weights returned as (in, out) — already transposed for x @ W."""
    bound = 1.0 / math.sqrt(n_embd)
    keys = jax.random.split(key, 8)

    def u(k, shape):
        return jax.random.uniform(k, shape, jnp.float32, -bound, bound)

    return {
        "wq": u(keys[0], (n_embd, n_embd)), "bq": u(keys[1], (1, n_embd)),
        "wk": u(keys[2], (n_embd, n_embd)), "bk": u(keys[3], (1, n_embd)),
        "wv": u(keys[4], (n_embd, n_embd)), "bv": u(keys[5], (1, n_embd)),
        "wp": u(keys[6], (n_embd, n_embd)), "bp": u(keys[7], (1, n_embd)),
    }


if __name__ == "__main__":
    B, T, C = 2, 8, 32
    N_HEAD = 4

    root = jax.random.PRNGKey(0)
    k_x, k_p = jax.random.split(root)
    x = jax.random.normal(k_x, (B, T, C), dtype=jnp.float32)
    params = _init_params(k_p, C)

    packed = pack_params(params, N_HEAD, mm_dtype=jnp.bfloat16)
    out = self_attention_pallas(x, packed, N_HEAD, mm_dtype=jnp.bfloat16)
    out = jax.block_until_ready(out)

    ref = _reference(x, params, N_HEAD, mm_dtype=jnp.bfloat16)
    np.testing.assert_allclose(np.asarray(out), np.asarray(ref),
                               rtol=2e-2, atol=2e-2)
    print("KERNEL_OK")
</pallas_src>

<mosaic_0001>
module attributes {stable_mosaic.version = 11 : i64} {
  func.func @kernel(%arg0: i32, %arg1: memref<8x32xf32, #tpu.memory_space<vmem>>, %arg2: memref<32x96xbf16, #tpu.memory_space<vmem>>, %arg3: memref<1x96xf32, #tpu.memory_space<vmem>>, %arg4: memref<32x32xbf16, #tpu.memory_space<vmem>>, %arg5: memref<1x32xf32, #tpu.memory_space<vmem>>, %arg6: memref<8x32xf32, #tpu.memory_space<vmem>>) attributes {dimension_semantics = [#tpu.dimension_semantics<parallel>], iteration_bounds = array<i64: 2>, scalar_prefetch = 0 : i64, scratch_operands = 0 : i64, tpu.core_type = #tpu.core_type<tc>, window_params = [{transform_indices = @transform_0, window_bounds = array<i64: 8, 32>}, {pipeline_mode = #tpu.pipeline_mode<synchronous>, transform_indices = @transform_1, window_bounds = array<i64: 32, 96>}, {pipeline_mode = #tpu.pipeline_mode<synchronous>, transform_indices = @transform_2, window_bounds = array<i64: 1, 96>}, {pipeline_mode = #tpu.pipeline_mode<synchronous>, transform_indices = @transform_3, window_bounds = array<i64: 32, 32>}, {pipeline_mode = #tpu.pipeline_mode<synchronous>, transform_indices = @transform_4, window_bounds = array<i64: 1, 32>}, {transform_indices = @transform_5, window_bounds = array<i64: 8, 32>}]} {
    %c0 = arith.constant 0 : index
    %c0_0 = arith.constant 0 : index
    %0 = vector.load %arg1[%c0, %c0_0] : memref<8x32xf32, #tpu.memory_space<vmem>>, vector<8x32xf32>
    %1 = arith.truncf %0 : vector<8x32xf32> to vector<8x32xbf16>
    %c0_1 = arith.constant 0 : index
    %c0_2 = arith.constant 0 : index
    %2 = vector.load %arg2[%c0_1, %c0_2] : memref<32x96xbf16, #tpu.memory_space<vmem>>, vector<32x96xbf16>
    %cst = arith.constant dense<0.000000e+00> : vector<8x96xf32>
    %3 = tpu.matmul %1, %2, %cst {dimension_numbers = #tpu.dot_dimension_numbers<[1], [0], [0], [1], [0, 0, 1, 1], [], []>} : vector<8x32xbf16>, vector<32x96xbf16>, vector<8x96xf32> -> vector<8x96xf32>
    %c0_3 = arith.constant 0 : index
    %c0_4 = arith.constant 0 : index
    %4 = vector.load %arg3[%c0_3, %c0_4] : memref<1x96xf32, #tpu.memory_space<vmem>>, vector<1x96xf32>
    %5 = vector.broadcast %4 : vector<1x96xf32> to vector<8x96xf32>
    %6 = arith.addf %3, %5 : vector<8x96xf32>
    %7 = arith.truncf %6 : vector<8x96xf32> to vector<8x96xbf16>
    %8 = vector.shape_cast %7 : vector<8x96xbf16> to vector<1x8x96xbf16>
    %9 = vector.extract_strided_slice %8 {offsets = [0, 0, 0], sizes = [1, 8, 8], strides = [1, 1, 1]} : vector<1x8x96xbf16> to vector<1x8x8xbf16>
    %10 = vector.extract_strided_slice %8 {offsets = [0, 0, 32], sizes = [1, 8, 8], strides = [1, 1, 1]} : vector<1x8x96xbf16> to vector<1x8x8xbf16>
    %11 = vector.extract_strided_slice %8 {offsets = [0, 0, 64], sizes = [1, 8, 8], strides = [1, 1, 1]} : vector<1x8x96xbf16> to vector<1x8x8xbf16>
    "tpu.trace_start"() <{level = 10 : i32, message = "bqd,bkd->bqk"}> : () -> ()
    %cst_5 = arith.constant dense<0.000000e+00> : vector<1x8x8xf32>
    %12 = tpu.matmul %9, %10, %cst_5 {dimension_numbers = #tpu.dot_dimension_numbers<[2], [2], [1], [1], [0, 0, 0, 1, 1, 1], [0], [0]>} : vector<1x8x8xbf16>, vector<1x8x8xbf16>, vector<1x8x8xf32> -> vector<1x8x8xf32>
    "tpu.trace_stop"() : () -> ()
    %cst_6 = arith.constant dense<0xFF800000> : vector<1x8xf32>
    %13 = vector.multi_reduction <maximumf>, %12, %cst_6 [2] : vector<1x8x8xf32> to vector<1x8xf32>
    %14 = vector.shape_cast %13 : vector<1x8xf32> to vector<1x8x1xf32>
    %15 = vector.broadcast %14 : vector<1x8x1xf32> to vector<1x8x8xf32>
    %16 = arith.subf %12, %15 : vector<1x8x8xf32>
    %17 = math.exp %16 : vector<1x8x8xf32>
    %cst_7 = arith.constant dense<0.000000e+00> : vector<1x8xf32>
    %18 = vector.multi_reduction <add>, %17, %cst_7 [2] : vector<1x8x8xf32> to vector<1x8xf32>
    %19 = vector.shape_cast %18 : vector<1x8xf32> to vector<1x8x1xf32>
    %20 = arith.truncf %17 : vector<1x8x8xf32> to vector<1x8x8xbf16>
    "tpu.trace_start"() <{level = 10 : i32, message = "bqk,bkd->bqd"}> : () -> ()
    %cst_8 = arith.constant dense<0.000000e+00> : vector<1x8x8xf32>
    %21 = tpu.matmul %20, %11, %cst_8 {dimension_numbers = #tpu.dot_dimension_numbers<[2], [1], [1], [2], [0, 0, 0, 1, 1, 2], [0], [0]>} : vector<1x8x8xbf16>, vector<1x8x8xbf16>, vector<1x8x8xf32> -> vector<1x8x8xf32>
    "tpu.trace_stop"() : () -> ()
    %22 = tpu.reciprocal %19 {approx = true} : vector<1x8x1xf32> -> vector<1x8x1xf32>
    %23 = vector.broadcast %22 : vector<1x8x1xf32> to vector<1x8x8xf32>
    %24 = arith.mulf %21, %23 : vector<1x8x8xf32>
    %25 = vector.extract_strided_slice %8 {offsets = [0, 0, 8], sizes = [1, 8, 8], strides = [1, 1, 1]} : vector<1x8x96xbf16> to vector<1x8x8xbf16>
    %26 = vector.extract_strided_slice %8 {offsets = [0, 0, 40], sizes = [1, 8, 8], strides = [1, 1, 1]} : vector<1x8x96xbf16> to vector<1x8x8xbf16>
    %27 = vector.extract_strided_slice %8 {offsets = [0, 0, 72], sizes = [1, 8, 8], strides = [1, 1, 1]} : vector<1x8x96xbf16> to vector<1x8x8xbf16>
    "tpu.trace_start"() <{level = 10 : i32, message = "bqd,bkd->bqk"}> : () -> ()
    %cst_9 = arith.constant dense<0.000000e+00> : vector<1x8x8xf32>
    %28 = tpu.matmul %25, %26, %cst_9 {dimension_numbers = #tpu.dot_dimension_numbers<[2], [2], [1], [1], [0, 0, 0, 1, 1, 1], [0], [0]>} : vector<1x8x8xbf16>, vector<1x8x8xbf16>, vector<1x8x8xf32> -> vector<1x8x8xf32>
    "tpu.trace_stop"() : () -> ()
    %cst_10 = arith.constant dense<0xFF800000> : vector<1x8xf32>
    %29 = vector.multi_reduction <maximumf>, %28, %cst_10 [2] : vector<1x8x8xf32> to vector<1x8xf32>
    %30 = vector.shape_cast %29 : vector<1x8xf32> to vector<1x8x1xf32>
    %31 = vector.broadcast %30 : vector<1x8x1xf32> to vector<1x8x8xf32>
    %32 = arith.subf %28, %31 : vector<1x8x8xf32>
    %33 = math.exp %32 : vector<1x8x8xf32>
    %cst_11 = arith.constant dense<0.000000e+00> : vector<1x8xf32>
    %34 = vector.multi_reduction <add>, %33, %cst_11 [2] : vector<1x8x8xf32> to vector<1x8xf32>
    %35 = vector.shape_cast %34 : vector<1x8xf32> to vector<1x8x1xf32>
    %36 = arith.truncf %33 : vector<1x8x8xf32> to vector<1x8x8xbf16>
    "tpu.trace_start"() <{level = 10 : i32, message = "bqk,bkd->bqd"}> : () -> ()
    %cst_12 = arith.constant dense<0.000000e+00> : vector<1x8x8xf32>
    %37 = tpu.matmul %36, %27, %cst_12 {dimension_numbers = #tpu.dot_dimension_numbers<[2], [1], [1], [2], [0, 0, 0, 1, 1, 2], [0], [0]>} : vector<1x8x8xbf16>, vector<1x8x8xbf16>, vector<1x8x8xf32> -> vector<1x8x8xf32>
    "tpu.trace_stop"() : () -> ()
    %38 = tpu.reciprocal %35 {approx = true} : vector<1x8x1xf32> -> vector<1x8x1xf32>
    %39 = vector.broadcast %38 : vector<1x8x1xf32> to vector<1x8x8xf32>
    %40 = arith.mulf %37, %39 : vector<1x8x8xf32>
    %41 = vector.extract_strided_slice %8 {offsets = [0, 0, 16], sizes = [1, 8, 8], strides = [1, 1, 1]} : vector<1x8x96xbf16> to vector<1x8x8xbf16>
    %42 = vector.extract_strided_slice %8 {offsets = [0, 0, 48], sizes = [1, 8, 8], strides = [1, 1, 1]} : vector<1x8x96xbf16> to vector<1x8x8xbf16>
    %43 = vector.extract_strided_slice %8 {offsets = [0, 0, 80], sizes = [1, 8, 8], strides = [1, 1, 1]} : vector<1x8x96xbf16> to vector<1x8x8xbf16>
    "tpu.trace_start"() <{level = 10 : i32, message = "bqd,bkd->bqk"}> : () -> ()
    %cst_13 = arith.constant dense<0.000000e+00> : vector<1x8x8xf32>
    %44 = tpu.matmul %41, %42, %cst_13 {dimension_numbers = #tpu.dot_dimension_numbers<[2], [2], [1], [1], [0, 0, 0, 1, 1, 1], [0], [0]>} : vector<1x8x8xbf16>, vector<1x8x8xbf16>, vector<1x8x8xf32> -> vector<1x8x8xf32>
    "tpu.trace_stop"() : () -> ()
    %cst_14 = arith.constant dense<0xFF800000> : vector<1x8xf32>
    %45 = vector.multi_reduction <maximumf>, %44, %cst_14 [2] : vector<1x8x8xf32> to vector<1x8xf32>
    %46 = vector.shape_cast %45 : vector<1x8xf32> to vector<1x8x1xf32>
    %47 = vector.broadcast %46 : vector<1x8x1xf32> to vector<1x8x8xf32>
    %48 = arith.subf %44, %47 : vector<1x8x8xf32>
    %49 = math.exp %48 : vector<1x8x8xf32>
    %cst_15 = arith.constant dense<0.000000e+00> : vector<1x8xf32>
    %50 = vector.multi_reduction <add>, %49, %cst_15 [2] : vector<1x8x8xf32> to vector<1x8xf32>
    %51 = vector.shape_cast %50 : vector<1x8xf32> to vector<1x8x1xf32>
    %52 = arith.truncf %49 : vector<1x8x8xf32> to vector<1x8x8xbf16>
    "tpu.trace_start"() <{level = 10 : i32, message = "bqk,bkd->bqd"}> : () -> ()
    %cst_16 = arith.constant dense<0.000000e+00> : vector<1x8x8xf32>
    %53 = tpu.matmul %52, %43, %cst_16 {dimension_numbers = #tpu.dot_dimension_numbers<[2], [1], [1], [2], [0, 0, 0, 1, 1, 2], [0], [0]>} : vector<1x8x8xbf16>, vector<1x8x8xbf16>, vector<1x8x8xf32> -> vector<1x8x8xf32>
    "tpu.trace_stop"() : () -> ()
    %54 = tpu.reciprocal %51 {approx = true} : vector<1x8x1xf32> -> vector<1x8x1xf32>
    %55 = vector.broadcast %54 : vector<1x8x1xf32> to vector<1x8x8xf32>
    %56 = arith.mulf %53, %55 : vector<1x8x8xf32>
    %57 = vector.extract_strided_slice %8 {offsets = [0, 0, 24], sizes = [1, 8, 8], strides = [1, 1, 1]} : vector<1x8x96xbf16> to vector<1x8x8xbf16>
    %58 = vector.extract_strided_slice %8 {offsets = [0, 0, 56], sizes = [1, 8, 8], strides = [1, 1, 1]} : vector<1x8x96xbf16> to vector<1x8x8xbf16>
    %59 = vector.extract_strided_slice %8 {offsets = [0, 0, 88], sizes = [1, 8, 8], strides = [1, 1, 1]} : vector<1x8x96xbf16> to vector<1x8x8xbf16>
    "tpu.trace_start"() <{level = 10 : i32, message = "bqd,bkd->bqk"}> : () -> ()
    %cst_17 = arith.constant dense<0.000000e+00> : vector<1x8x8xf32>
    %60 = tpu.matmul %57, %58, %cst_17 {dimension_numbers = #tpu.dot_dimension_numbers<[2], [2], [1], [1], [0, 0, 0, 1, 1, 1], [0], [0]>} : vector<1x8x8xbf16>, vector<1x8x8xbf16>, vector<1x8x8xf32> -> vector<1x8x8xf32>
    "tpu.trace_stop"() : () -> ()
    %cst_18 = arith.constant dense<0xFF800000> : vector<1x8xf32>
    %61 = vector.multi_reduction <maximumf>, %60, %cst_18 [2] : vector<1x8x8xf32> to vector<1x8xf32>
    %62 = vector.shape_cast %61 : vector<1x8xf32> to vector<1x8x1xf32>
    %63 = vector.broadcast %62 : vector<1x8x1xf32> to vector<1x8x8xf32>
    %64 = arith.subf %60, %63 : vector<1x8x8xf32>
    %65 = math.exp %64 : vector<1x8x8xf32>
    %cst_19 = arith.constant dense<0.000000e+00> : vector<1x8xf32>
    %66 = vector.multi_reduction <add>, %65, %cst_19 [2] : vector<1x8x8xf32> to vector<1x8xf32>
    %67 = vector.shape_cast %66 : vector<1x8xf32> to vector<1x8x1xf32>
    %68 = arith.truncf %65 : vector<1x8x8xf32> to vector<1x8x8xbf16>
    "tpu.trace_start"() <{level = 10 : i32, message = "bqk,bkd->bqd"}> : () -> ()
    %cst_20 = arith.constant dense<0.000000e+00> : vector<1x8x8xf32>
    %69 = tpu.matmul %68, %59, %cst_20 {dimension_numbers = #tpu.dot_dimension_numbers<[2], [1], [1], [2], [0, 0, 0, 1, 1, 2], [0], [0]>} : vector<1x8x8xbf16>, vector<1x8x8xbf16>, vector<1x8x8xf32> -> vector<1x8x8xf32>
    "tpu.trace_stop"() : () -> ()
    %70 = tpu.reciprocal %67 {approx = true} : vector<1x8x1xf32> -> vector<1x8x1xf32>
    %71 = vector.broadcast %70 : vector<1x8x1xf32> to vector<1x8x8xf32>
    %72 = arith.mulf %69, %71 : vector<1x8x8xf32>
    %73 = tpu.concatenate %24, %40, %56, %72 in 2 : vector<1x8x8xf32>, vector<1x8x8xf32>, vector<1x8x8xf32>, vector<1x8x8xf32> -> vector<1x8x32xf32>
    %74 = vector.shape_cast %73 : vector<1x8x32xf32> to vector<8x32xf32>
    %75 = arith.truncf %74 : vector<8x32xf32> to vector<8x32xbf16>
    %c0_21 = arith.constant 0 : index
    %c0_22 = arith.constant 0 : index
    %76 = vector.load %arg4[%c0_21, %c0_22] : memref<32x32xbf16, #tpu.memory_space<vmem>>, vector<32x32xbf16>
    %cst_23 = arith.constant dense<0.000000e+00> : vector<8x32xf32>
    %77 = tpu.matmul %75, %76, %cst_23 {dimension_numbers = #tpu.dot_dimension_numbers<[1], [0], [0], [1], [0, 0, 1, 1], [], []>} : vector<8x32xbf16>, vector<32x32xbf16>, vector<8x32xf32> -> vector<8x32xf32>
    %c0_24 = arith.constant 0 : index
    %c0_25 = arith.constant 0 : index
    %78 = vector.load %arg5[%c0_24, %c0_25] : memref<1x32xf32, #tpu.memory_space<vmem>>, vector<1x32xf32>
    %79 = vector.broadcast %78 : vector<1x32xf32> to vector<8x32xf32>
    %80 = arith.addf %77, %79 : vector<8x32xf32>
    %c0_26 = arith.constant 0 : index
    %c0_27 = arith.constant 0 : index
    %81 = vector.load %arg6[%c0_26, %c0_27] : memref<8x32xf32, #tpu.memory_space<vmem>>, vector<8x32xf32>
    tpu.vector_store %arg6[%c0_26, %c0_27], %80 {strides = array<i32>} : memref<8x32xf32, #tpu.memory_space<vmem>>, vector<8x32xf32>,
    return
  }
  func.func @transform_0(%arg0: i32) -> (i32, i32) {
    %c0_i32 = arith.constant 0 : i32
    %c0_i32_0 = arith.constant 0 : i32
    return %arg0, %c0_i32 : i32, i32
  }
  func.func @transform_1(%arg0: i32) -> (i32, i32) {
    %c0_i32 = arith.constant 0 : i32
    %c0_i32_0 = arith.constant 0 : i32
    %c0_i32_1 = arith.constant 0 : i32
    return %c0_i32, %c0_i32_0 : i32, i32
  }
  func.func @transform_2(%arg0: i32) -> (i32, i32) {
    %c0_i32 = arith.constant 0 : i32
    %c0_i32_0 = arith.constant 0 : i32
    %c0_i32_1 = arith.constant 0 : i32
    return %c0_i32, %c0_i32_0 : i32, i32
  }
  func.func @transform_3(%arg0: i32) -> (i32, i32) {
    %c0_i32 = arith.constant 0 : i32
    %c0_i32_0 = arith.constant 0 : i32
    %c0_i32_1 = arith.constant 0 : i32
    return %c0_i32, %c0_i32_0 : i32, i32
  }
  func.func @transform_4(%arg0: i32) -> (i32, i32) {
    %c0_i32 = arith.constant 0 : i32
    %c0_i32_0 = arith.constant 0 : i32
    %c0_i32_1 = arith.constant 0 : i32
    return %c0_i32, %c0_i32_0 : i32, i32
  }
  func.func @transform_5(%arg0: i32) -> (i32, i32) {
    %c0_i32 = arith.constant 0 : i32
    %c0_i32_0 = arith.constant 0 : i32
    return %arg0, %c0_i32 : i32, i32
  }
}

module attributes {stable_mosaic.version = 11 : i64} {
  func.func @kernel(%arg0: i32, %arg1: memref<8x32xf32, #tpu.memory_space<vmem>>, %arg2: memref<32x96xbf16, #tpu.memory_space<vmem>>, %arg3: memref<1x96xf32, #tpu.memory_space<vmem>>, %arg4: memref<32x32xbf16, #tpu.memory_space<vmem>>, %arg5: memref<1x32xf32, #tpu.memory_space<vmem>>, %arg6: memref<8x32xf32, #tpu.memory_space<vmem>>) attributes {dimension_semantics = [#tpu.dimension_semantics<parallel>], iteration_bounds = array<i64: 2>, scalar_prefetch = 0 : i64, scratch_operands = 0 : i64, tpu.core_type = #tpu.core_type<tc>, window_params = [{transform_indices = @transform_0, window_bounds = array<i64: 8, 32>}, {pipeline_mode = #tpu.pipeline_mode<synchronous>, transform_indices = @transform_1, window_bounds = array<i64: 32, 96>}, {pipeline_mode = #tpu.pipeline_mode<synchronous>, transform_indices = @transform_2, window_bounds = array<i64: 1, 96>}, {pipeline_mode = #tpu.pipeline_mode<synchronous>, transform_indices = @transform_3, window_bounds = array<i64: 32, 32>}, {pipeline_mode = #tpu.pipeline_mode<synchronous>, transform_indices = @transform_4, window_bounds = array<i64: 1, 32>}, {transform_indices = @transform_5, window_bounds = array<i64: 8, 32>}]} {
    %c0 = arith.constant 0 : index
    %c0_0 = arith.constant 0 : index
    %0 = vector.load %arg1[%c0, %c0_0] : memref<8x32xf32, #tpu.memory_space<vmem>>, vector<8x32xf32>
    %1 = arith.truncf %0 : vector<8x32xf32> to vector<8x32xbf16>
    %c0_1 = arith.constant 0 : index
    %c0_2 = arith.constant 0 : index
    %2 = vector.load %arg2[%c0_1, %c0_2] : memref<32x96xbf16, #tpu.memory_space<vmem>>, vector<32x96xbf16>
    %cst = arith.constant dense<0.000000e+00> : vector<8x96xf32>
    %3 = tpu.matmul %1, %2, %cst {dimension_numbers = #tpu.dot_dimension_numbers<[1], [0], [0], [1], [0, 0, 1, 1], [], []>} : vector<8x32xbf16>, vector<32x96xbf16>, vector<8x96xf32> -> vector<8x96xf32>
    %c0_3 = arith.constant 0 : index
    %c0_4 = arith.constant 0 : index
    %4 = vector.load %arg3[%c0_3, %c0_4] : memref<1x96xf32, #tpu.memory_space<vmem>>, vector<1x96xf32>
    %5 = vector.broadcast %4 : vector<1x96xf32> to vector<8x96xf32>
    %6 = arith.addf %3, %5 : vector<8x96xf32>
    %7 = arith.truncf %6 : vector<8x96xf32> to vector<8x96xbf16>
    %8 = vector.shape_cast %7 : vector<8x96xbf16> to vector<1x8x96xbf16>
    %9 = vector.extract_strided_slice %8 {offsets = [0, 0, 0], sizes = [1, 8, 8], strides = [1, 1, 1]} : vector<1x8x96xbf16> to vector<1x8x8xbf16>
    %10 = vector.extract_strided_slice %8 {offsets = [0, 0, 32], sizes = [1, 8, 8], strides = [1, 1, 1]} : vector<1x8x96xbf16> to vector<1x8x8xbf16>
    %11 = vector.extract_strided_slice %8 {offsets = [0, 0, 64], sizes = [1, 8, 8], strides = [1, 1, 1]} : vector<1x8x96xbf16> to vector<1x8x8xbf16>
    "tpu.trace_start"() <{level = 10 : i32, message = "bqd,bkd->bqk"}> : () -> ()
    %cst_5 = arith.constant dense<0.000000e+00> : vector<1x8x8xf32>
    %12 = tpu.matmul %9, %10, %cst_5 {dimension_numbers = #tpu.dot_dimension_numbers<[2], [2], [1], [1], [0, 0, 0, 1, 1, 1], [0], [0]>} : vector<1x8x8xbf16>, vector<1x8x8xbf16>, vector<1x8x8xf32> -> vector<1x8x8xf32>
    "tpu.trace_stop"() : () -> ()
    %cst_6 = arith.constant dense<0xFF800000> : vector<1x8xf32>
    %13 = vector.multi_reduction <maximumf>, %12, %cst_6 [2] : vector<1x8x8xf32> to vector<1x8xf32>
    %14 = vector.shape_cast %13 : vector<1x8xf32> to vector<1x8x1xf32>
    %15 = vector.broadcast %14 : vector<1x8x1xf32> to vector<1x8x8xf32>
    %16 = arith.subf %12, %15 : vector<1x8x8xf32>
    %17 = math.exp %16 : vector<1x8x8xf32>
    %cst_7 = arith.constant dense<0.000000e+00> : vector<1x8xf32>
    %18 = vector.multi_reduction <add>, %17, %cst_7 [2] : vector<1x8x8xf32> to vector<1x8xf32>
    %19 = vector.shape_cast %18 : vector<1x8xf32> to vector<1x8x1xf32>
    %20 = arith.truncf %17 : vector<1x8x8xf32> to vector<1x8x8xbf16>
    "tpu.trace_start"() <{level = 10 : i32, message = "bqk,bkd->bqd"}> : () -> ()
    %cst_8 = arith.constant dense<0.000000e+00> : vector<1x8x8xf32>
    %21 = tpu.matmul %20, %11, %cst_8 {dimension_numbers = #tpu.dot_dimension_numbers<[2], [1], [1], [2], [0, 0, 0, 1, 1, 2], [0], [0]>} : vector<1x8x8xbf16>, vector<1x8x8xbf16>, vector<1x8x8xf32> -> vector<1x8x8xf32>
    "tpu.trace_stop"() : () -> ()
    %22 = tpu.reciprocal %19 {approx = true} : vector<1x8x1xf32> -> vector<1x8x1xf32>
    %23 = vector.broadcast %22 : vector<1x8x1xf32> to vector<1x8x8xf32>
    %24 = arith.mulf %21, %23 : vector<1x8x8xf32>
    %25 = vector.extract_strided_slice %8 {offsets = [0, 0, 8], sizes = [1, 8, 8], strides = [1, 1, 1]} : vector<1x8x96xbf16> to vector<1x8x8xbf16>
    %26 = vector.extract_strided_slice %8 {offsets = [0, 0, 40], sizes = [1, 8, 8], strides = [1, 1, 1]} : vector<1x8x96xbf16> to vector<1x8x8xbf16>
    %27 = vector.extract_strided_slice %8 {offsets = [0, 0, 72], sizes = [1, 8, 8], strides = [1, 1, 1]} : vector<1x8x96xbf16> to vector<1x8x8xbf16>
    "tpu.trace_start"() <{level = 10 : i32, message = "bqd,bkd->bqk"}> : () -> ()
    %cst_9 = arith.constant dense<0.000000e+00> : vector<1x8x8xf32>
    %28 = tpu.matmul %25, %26, %cst_9 {dimension_numbers = #tpu.dot_dimension_numbers<[2], [2], [1], [1], [0, 0, 0, 1, 1, 1], [0], [0]>} : vector<1x8x8xbf16>, vector<1x8x8xbf16>, vector<1x8x8xf32> -> vector<1x8x8xf32>
    "tpu.trace_stop"() : () -> ()
    %cst_10 = arith.constant dense<0xFF800000> : vector<1x8xf32>
    %29 = vector.multi_reduction <maximumf>, %28, %cst_10 [2] : vector<1x8x8xf32> to vector<1x8xf32>
    %30 = vector.shape_cast %29 : vector<1x8xf32> to vector<1x8x1xf32>
    %31 = vector.broadcast %30 : vector<1x8x1xf32> to vector<1x8x8xf32>
    %32 = arith.subf %28, %31 : vector<1x8x8xf32>
    %33 = math.exp %32 : vector<1x8x8xf32>
    %cst_11 = arith.constant dense<0.000000e+00> : vector<1x8xf32>
    %34 = vector.multi_reduction <add>, %33, %cst_11 [2] : vector<1x8x8xf32> to vector<1x8xf32>
    %35 = vector.shape_cast %34 : vector<1x8xf32> to vector<1x8x1xf32>
    %36 = arith.truncf %33 : vector<1x8x8xf32> to vector<1x8x8xbf16>
    "tpu.trace_start"() <{level = 10 : i32, message = "bqk,bkd->bqd"}> : () -> ()
    %cst_12 = arith.constant dense<0.000000e+00> : vector<1x8x8xf32>
    %37 = tpu.matmul %36, %27, %cst_12 {dimension_numbers = #tpu.dot_dimension_numbers<[2], [1], [1], [2], [0, 0, 0, 1, 1, 2], [0], [0]>} : vector<1x8x8xbf16>, vector<1x8x8xbf16>, vector<1x8x8xf32> -> vector<1x8x8xf32>
    "tpu.trace_stop"() : () -> ()
    %38 = tpu.reciprocal %35 {approx = true} : vector<1x8x1xf32> -> vector<1x8x1xf32>
    %39 = vector.broadcast %38 : vector<1x8x1xf32> to vector<1x8x8xf32>
    %40 = arith.mulf %37, %39 : vector<1x8x8xf32>
    %41 = vector.extract_strided_slice %8 {offsets = [0, 0, 16], sizes = [1, 8, 8], strides = [1, 1, 1]} : vector<1x8x96xbf16> to vector<1x8x8xbf16>
    %42 = vector.extract_strided_slice %8 {offsets = [0, 0, 48], sizes = [1, 8, 8], strides = [1, 1, 1]} : vector<1x8x96xbf16> to vector<1x8x8xbf16>
    %43 = vector.extract_strided_slice %8 {offsets = [0, 0, 80], sizes = [1, 8, 8], strides = [1, 1, 1]} : vector<1x8x96xbf16> to vector<1x8x8xbf16>
    "tpu.trace_start"() <{level = 10 : i32, message = "bqd,bkd->bqk"}> : () -> ()
    %cst_13 = arith.constant dense<0.000000e+00> : vector<1x8x8xf32>
    %44 = tpu.matmul %41, %42, %cst_13 {dimension_numbers = #tpu.dot_dimension_numbers<[2], [2], [1], [1], [0, 0, 0, 1, 1, 1], [0], [0]>} : vector<1x8x8xbf16>, vector<1x8x8xbf16>, vector<1x8x8xf32> -> vector<1x8x8xf32>
    "tpu.trace_stop"() : () -> ()
    %cst_14 = arith.constant dense<0xFF800000> : vector<1x8xf32>
    %45 = vector.multi_reduction <maximumf>, %44, %cst_14 [2] : vector<1x8x8xf32> to vector<1x8xf32>
    %46 = vector.shape_cast %45 : vector<1x8xf32> to vector<1x8x1xf32>
    %47 = vector.broadcast %46 : vector<1x8x1xf32> to vector<1x8x8xf32>
    %48 = arith.subf %44, %47 : vector<1x8x8xf32>
    %49 = math.exp %48 : vector<1x8x8xf32>
    %cst_15 = arith.constant dense<0.000000e+00> : vector<1x8xf32>
    %50 = vector.multi_reduction <add>, %49, %cst_15 [2] : vector<1x8x8xf32> to vector<1x8xf32>
    %51 = vector.shape_cast %50 : vector<1x8xf32> to vector<1x8x1xf32>
    %52 = arith.truncf %49 : vector<1x8x8xf32> to vector<1x8x8xbf16>
    "tpu.trace_start"() <{level = 10 : i32, message = "bqk,bkd->bqd"}> : () -> ()
    %cst_16 = arith.constant dense<0.000000e+00> : vector<1x8x8xf32>
    %53 = tpu.matmul %52, %43, %cst_16 {dimension_numbers = #tpu.dot_dimension_numbers<[2], [1], [1], [2], [0, 0, 0, 1, 1, 2], [0], [0]>} : vector<1x8x8xbf16>, vector<1x8x8xbf16>, vector<1x8x8xf32> -> vector<1x8x8xf32>
    "tpu.trace_stop"() : () -> ()
    %54 = tpu.reciprocal %51 {approx = true} : vector<1x8x1xf32> -> vector<1x8x1xf32>
    %55 = vector.broadcast %54 : vector<1x8x1xf32> to vector<1x8x8xf32>
    %56 = arith.mulf %53, %55 : vector<1x8x8xf32>
    %57 = vector.extract_strided_slice %8 {offsets = [0, 0, 24], sizes = [1, 8, 8], strides = [1, 1, 1]} : vector<1x8x96xbf16> to vector<1x8x8xbf16>
    %58 = vector.extract_strided_slice %8 {offsets = [0, 0, 56], sizes = [1, 8, 8], strides = [1, 1, 1]} : vector<1x8x96xbf16> to vector<1x8x8xbf16>
    %59 = vector.extract_strided_slice %8 {offsets = [0, 0, 88], sizes = [1, 8, 8], strides = [1, 1, 1]} : vector<1x8x96xbf16> to vector<1x8x8xbf16>
    "tpu.trace_start"() <{level = 10 : i32, message = "bqd,bkd->bqk"}> : () -> ()
    %cst_17 = arith.constant dense<0.000000e+00> : vector<1x8x8xf32>
    %60 = tpu.matmul %57, %58, %cst_17 {dimension_numbers = #tpu.dot_dimension_numbers<[2], [2], [1], [1], [0, 0, 0, 1, 1, 1], [0], [0]>} : vector<1x8x8xbf16>, vector<1x8x8xbf16>, vector<1x8x8xf32> -> vector<1x8x8xf32>
    "tpu.trace_stop"() : () -> ()
    %cst_18 = arith.constant dense<0xFF800000> : vector<1x8xf32>
    %61 = vector.multi_reduction <maximumf>, %60, %cst_18 [2] : vector<1x8x8xf32> to vector<1x8xf32>
    %62 = vector.shape_cast %61 : vector<1x8xf32> to vector<1x8x1xf32>
    %63 = vector.broadcast %62 : vector<1x8x1xf32> to vector<1x8x8xf32>
    %64 = arith.subf %60, %63 : vector<1x8x8xf32>
    %65 = math.exp %64 : vector<1x8x8xf32>
    %cst_19 = arith.constant dense<0.000000e+00> : vector<1x8xf32>
    %66 = vector.multi_reduction <add>, %65, %cst_19 [2] : vector<1x8x8xf32> to vector<1x8xf32>
    %67 = vector.shape_cast %66 : vector<1x8xf32> to vector<1x8x1xf32>
    %68 = arith.truncf %65 : vector<1x8x8xf32> to vector<1x8x8xbf16>
    "tpu.trace_start"() <{level = 10 : i32, message = "bqk,bkd->bqd"}> : () -> ()
    %cst_20 = arith.constant dense<0.000000e+00> : vector<1x8x8xf32>
    %69 = tpu.matmul %68, %59, %cst_20 {dimension_numbers = #tpu.dot_dimension_numbers<[2], [1], [1], [2], [0, 0, 0, 1, 1, 2], [0], [0]>} : vector<1x8x8xbf16>, vector<1x8x8xbf16>, vector<1x8x8xf32> -> vector<1x8x8xf32>
    "tpu.trace_stop"() : () -> ()
    %70 = tpu.reciprocal %67 {approx = true} : vector<1x8x1xf32> -> vector<1x8x1xf32>
    %71 = vector.broadcast %70 : vector<1x8x1xf32> to vector<1x8x8xf32>
    %72 = arith.mulf %69, %71 : vector<1x8x8xf32>
    %73 = tpu.concatenate %24, %40, %56, %72 in 2 : vector<1x8x8xf32>, vector<1x8x8xf32>, vector<1x8x8xf32>, vector<1x8x8xf32> -> vector<1x8x32xf32>
    %74 = vector.shape_cast %73 : vector<1x8x32xf32> to vector<8x32xf32>
    %75 = arith.truncf %74 : vector<8x32xf32> to vector<8x32xbf16>
    %c0_21 = arith.constant 0 : index
    %c0_22 = arith.constant 0 : index
    %76 = vector.load %arg4[%c0_21, %c0_22] : memref<32x32xbf16, #tpu.memory_space<vmem>>, vector<32x32xbf16>
    %cst_23 = arith.constant dense<0.000000e+00> : vector<8x32xf32>
    %77 = tpu.matmul %75, %76, %cst_23 {dimension_numbers = #tpu.dot_dimension_numbers<[1], [0], [0], [1], [0, 0, 1, 1], [], []>} : vector<8x32xbf16>, vector<32x32xbf16>, vector<8x32xf32> -> vector<8x32xf32>
    %c0_24 = arith.constant 0 : index
    %c0_25 = arith.constant 0 : index
    %78 = vector.load %arg5[%c0_24, %c0_25] : memref<1x32xf32, #tpu.memory_space<vmem>>, vector<1x32xf32>
    %79 = vector.broadcast %78 : vector<1x32xf32> to vector<8x32xf32>
    %80 = arith.addf %77, %79 : vector<8x32xf32>
    %c0_26 = arith.constant 0 : index
    %c0_27 = arith.constant 0 : index
    %81 = vector.load %arg6[%c0_26, %c0_27] : memref<8x32xf32, #tpu.memory_space<vmem>>, vector<8x32xf32>
    tpu.vector_store %arg6[%c0_26, %c0_27], %80 {strides = array<i32>} : memref<8x32xf32, #tpu.memory_space<vmem>>, vector<8x32xf32>,
    return
  }
  func.func @transform_0(%arg0: i32) -> (i32, i32) {
    %c0_i32 = arith.constant 0 : i32
    %c0_i32_0 = arith.constant 0 : i32
    return %arg0, %c0_i32 : i32, i32
  }
  func.func @transform_1(%arg0: i32) -> (i32, i32) {
    %c0_i32 = arith.constant 0 : i32
    %c0_i32_0 = arith.constant 0 : i32
    %c0_i32_1 = arith.constant 0 : i32
    return %c0_i32, %c0_i32_0 : i32, i32
  }
  func.func @transform_2(%arg0: i32) -> (i32, i32) {
    %c0_i32 = arith.constant 0 : i32
    %c0_i32_0 = arith.constant 0 : i32
    %c0_i32_1 = arith.constant 0 : i32
    return %c0_i32, %c0_i32_0 : i32, i32
  }
  func.func @transform_3(%arg0: i32) -> (i32, i32) {
    %c0_i32 = arith.constant 0 : i32
    %c0_i32_0 = arith.constant 0 : i32
    %c0_i32_1 = arith.constant 0 : i32
    return %c0_i32, %c0_i32_0 : i32, i32
  }
  func.func @transform_4(%arg0: i32) -> (i32, i32) {
    %c0_i32 = arith.constant 0 : i32
    %c0_i32_0 = arith.constant 0 : i32
    %c0_i32_1 = arith.constant 0 : i32
    return %c0_i32, %c0_i32_0 : i32, i32
  }
  func.func @transform_5(%arg0: i32) -> (i32, i32) {
    %c0_i32 = arith.constant 0 : i32
    %c0_i32_0 = arith.constant 0 : i32
    return %arg0, %c0_i32 : i32, i32
  }
}

</mosaic_0001>

<llo_original>
// kernel: tpu_custom_call.1
$region0: #{tpu_custom_call.1}
  #allocation0 [shape = 'u32[]', space=smem, size = 0x4, offset = 0x4, fixed_abs, tag = 'smem constant byte address 0x4 - core index']
  #allocation1 [shape = 'u32[144,128]{1,0:T(1,128)}', space=vmem, size = 0x12000, scoped, tag = 'internal scratch']
  %s0 = inlined_call_operand.hbm [shape: f32[16,32], index: 0, kind: input, shape index: {}]
  %s1 = inlined_call_operand.hbm [shape: bf16[32,96], index: 1, kind: input, shape index: {}]
  %s2 = inlined_call_operand.vmem [shape: f32[1,96], index: 2, kind: input, shape index: {}]
  %s3 = inlined_call_operand.hbm [shape: bf16[32,32], index: 3, kind: input, shape index: {}]
  %s4 = inlined_call_operand.vmem [shape: f32[1,32], index: 4, kind: input, shape index: {}]
  %s5 = inlined_call_operand.hbm [shape: f32[16,32], index: 5, kind: output, shape index: {}]
  %s6 = sld [smem:[#allocation0]]
  $region65: #{tpu_custom_call.1} parent=0
    _
  %s8 = ssub.s32 1, %s6
  %s9 = scalar_select 0, %s8, %s6
  $region1: #{tpu_custom_call.1} parent=0
    #allocation2 [shape = 'u8[8192]{0}', space=vmem, size = 0x2000, scoped, tag = 'input window, operand 0']
    #allocation3 [shape = 's32[2]{0}', space=sflag, size = 0x8, scoped, tag = 'scoped memory for tpu_custom_call.1']
    #allocation4 [shape = 's32[2]{0}', space=sflag, size = 0x8, scoped, tag = 'scoped memory for tpu_custom_call.1']
    #allocation5 [shape = 'u8[8192]{0}', space=vmem, size = 0x2000, scoped, tag = 'input window, operand 1, single buffered']
    #allocation6 [shape = 's32[1]{0}', space=sflag, size = 0x4, scoped, tag = 'scoped memory for tpu_custom_call.1']
    #allocation7 [shape = 'u8[8192]{0}', space=vmem, size = 0x2000, scoped, tag = 'input window, operand 3, single buffered']
    #allocation8 [shape = 'u8[8192]{0}', space=vmem, size = 0x2000, scoped, tag = 'output window, operand 0']
    %10 = vsyncpa [#allocation3], 0
    %s11 = scalar_lea.sflag [#allocation3], 1
    %12 = vsyncpa %s11, 0
    %13 = vsyncpa [#allocation6], 0
    %14 = vsyncpa [#allocation4], 0
    %s15 = scalar_lea.sflag [#allocation4], 1
    %16 = vsyncpa %s15, 0
    loop: start=0, step=1, limit=4
    $region2: #{tpu_custom_call.1} parent=1 // loop_pre_header
      _
    $region3: #{tpu_custom_call.1} parent=1 // loop_header
      %s18 = sphi 0, %s22
      %p19 = scmp.ge.s32.totalorder %s18, 4
      %s28 = sphi 0, %s30
      %s31 = sphi 0, %s28
      %s32 = sphi 0, %s31
      %s48 = sphi 0, %s32
      %s52 = sphi 0, %s52
      %s54 = sphi 0, %s52
      %s55 = sphi 0, %s54
      %s69 = sphi 0, %s55
      %s73 = sphi 0, %s73
      %s75 = sphi 0, %s73
      %s76 = sphi 0, %s75
      %s90 = sphi 0, %s76
      %s94 = sphi 0, %s94
      %s96 = sphi 0, %s94
      %s97 = sphi 0, %s96
      %s111 = sphi 0, %s97
      %s115 = sphi 0, %s115
      %s117 = sphi 0, %s115
      %s118 = sphi 0, %s117
      %s132 = sphi 0, %s118
      %s138 = sphi 0, %s140
      %s141 = sphi 0, %s138
      %s142 = sphi 0, %s141
      %s158 = sphi 0, %s142
    $region4: #{tpu_custom_call.1} parent=1 // loop_header_branch
      %21 = sbr.rel (%p19) target = $region8
    $region5: #{tpu_custom_call.1} parent=1 // loop_body
      %s23 = ssub.s32 %s18, 1
      %s24 = ssub.s32 %s18, 2
      %s25 = sadd.s32 %s18, 1
      %s26 = ssub.s32 %s18, %s25
      %p27 = scmp.eq.s32.totalorder %s26, 0
      %s29 = sadd.s32 %s28, 1
      %s30 = scalar_select %p27, %s28, %s29
      %p33 = pneg %p27
      %p34 = scmp.eq.s32.totalorder %s18, 1
      %p35 = por %p33, %p34
      %p36 = scmp.ne.s32.totalorder %s28, %s31
      %p37 = scmp.eq.s32.totalorder %s18, 0
      %p38 = por %p36, %p37
      %p39 = scmp.ne.s32.totalorder %s28, %s31
      %p40 = scmp.eq.s32.totalorder %s23, 1
      %p41 = por %p39, %p40
      %p42 = scmp.ne.s32.totalorder %s31, %s32
      %p43 = scmp.eq.s32.totalorder %s23, 0
      %p44 = por %p42, %p43
      %p45 = scmp.ne.s32.totalorder %s31, %s32
      %p46 = scmp.eq.s32.totalorder %s24, 1
      %p47 = por %p45, %p46
      %p49 = scmp.ne.s32.totalorder %s32, %s48
      %p50 = scmp.eq.s32.totalorder %s24, 0
      %p51 = por %p49, %p50
      %s53 = sadd.s32 %s52, 1
      %p56 = scmp.eq.s32.totalorder %s18, 1
      %p57 = scmp.ne.s32.totalorder %s52, %s54
      %p58 = scmp.eq.s32.totalorder %s18, 0
      %p59 = por %p57, %p58
      %p60 = scmp.ne.s32.totalorder %s52, %s54
      %p61 = scmp.eq.s32.totalorder %s23, 1
      %p62 = por %p60, %p61
      %p63 = scmp.ne.s32.totalorder %s54, %s55
      %p64 = scmp.eq.s32.totalorder %s23, 0
      %p65 = por %p63, %p64
      %p66 = scmp.ne.s32.totalorder %s54, %s55
      %p67 = scmp.eq.s32.totalorder %s24, 1
      %p68 = por %p66, %p67
      %p70 = scmp.ne.s32.totalorder %s55, %s69
      %p71 = scmp.eq.s32.totalorder %s24, 0
      %p72 = por %p70, %p71
      %s74 = sadd.s32 %s73, 1
      %p77 = scmp.eq.s32.totalorder %s18, 1
      %p78 = scmp.ne.s32.totalorder %s73, %s75
      %p79 = scmp.eq.s32.totalorder %s18, 0
      %p80 = por %p78, %p79
      %p81 = scmp.ne.s32.totalorder %s73, %s75
      %p82 = scmp.eq.s32.totalorder %s23, 1
      %p83 = por %p81, %p82
      %p84 = scmp.ne.s32.totalorder %s75, %s76
      %p85 = scmp.eq.s32.totalorder %s23, 0
      %p86 = por %p84, %p85
      %p87 = scmp.ne.s32.totalorder %s75, %s76
      %p88 = scmp.eq.s32.totalorder %s24, 1
      %p89 = por %p87, %p88
      %p91 = scmp.ne.s32.totalorder %s76, %s90
      %p92 = scmp.eq.s32.totalorder %s24, 0
      %p93 = por %p91, %p92
      %s95 = sadd.s32 %s94, 1
      %p98 = scmp.eq.s32.totalorder %s18, 1
      %p99 = scmp.ne.s32.totalorder %s94, %s96
      %p100 = scmp.eq.s32.totalorder %s18, 0
      %p101 = por %p99, %p100
      %p102 = scmp.ne.s32.totalorder %s94, %s96
      %p103 = scmp.eq.s32.totalorder %s23, 1
      %p104 = por %p102, %p103
      %p105 = scmp.ne.s32.totalorder %s96, %s97
      %p106 = scmp.eq.s32.totalorder %s23, 0
      %p107 = por %p105, %p106
      %p108 = scmp.ne.s32.totalorder %s96, %s97
      %p109 = scmp.eq.s32.totalorder %s24, 1
      %p110 = por %p108, %p109
      %p112 = scmp.ne.s32.totalorder %s97, %s111
      %p113 = scmp.eq.s32.totalorder %s24, 0
      %p114 = por %p112, %p113
      %s116 = sadd.s32 %s115, 1
      %p119 = scmp.eq.s32.totalorder %s18, 1
      %p120 = scmp.ne.s32.totalorder %s115, %s117
      %p121 = scmp.eq.s32.totalorder %s18, 0
      %p122 = por %p120, %p121
      %p123 = scmp.ne.s32.totalorder %s115, %s117
      %p124 = scmp.eq.s32.totalorder %s23, 1
      %p125 = por %p123, %p124
      %p126 = scmp.ne.s32.totalorder %s117, %s118
      %p127 = scmp.eq.s32.totalorder %s23, 0
      %p128 = por %p126, %p127
      %p129 = scmp.ne.s32.totalorder %s117, %s118
      %p130 = scmp.eq.s32.totalorder %s24, 1
      %p131 = por %p129, %p130
      %p133 = scmp.ne.s32.totalorder %s118, %s132
      %p134 = scmp.eq.s32.totalorder %s24, 0
      %p135 = por %p133, %p134
      %s136 = ssub.s32 %s18, %s25
      %p137 = scmp.eq.s32.totalorder %s136, 0
      %s139 = sadd.s32 %s138, 1
      %s140 = scalar_select %p137, %s138, %s139
      %p143 = pneg %p137
      %p144 = scmp.eq.s32.totalorder %s18, 1
      %p145 = por %p143, %p144
      %p146 = scmp.ne.s32.totalorder %s138, %s141
      %p147 = scmp.eq.s32.totalorder %s18, 0
      %p148 = por %p146, %p147
      %p149 = scmp.ne.s32.totalorder %s138, %s141
      %p150 = scmp.eq.s32.totalorder %s23, 1
      %p151 = por %p149, %p150
      %p152 = scmp.ne.s32.totalorder %s141, %s142
      %p153 = scmp.eq.s32.totalorder %s23, 0
      %p154 = por %p152, %p153
      %p155 = scmp.ne.s32.totalorder %s141, %s142
      %p156 = scmp.eq.s32.totalorder %s24, 1
      %p157 = por %p155, %p156
      %p159 = scmp.ne.s32.totalorder %s142, %s158
      %p160 = scmp.eq.s32.totalorder %s24, 0
      %p161 = por %p159, %p160
      %p162 = scmp.le.s32.totalorder 1, %s18
      %p163 = scmp.lt.s32.totalorder %s18, 3
      %p164 = pnand %p162, %p163
      %p165 = pneg %p164
      // Predicated region
      $region9: #{tpu_custom_call.1} parent=5 // pred_check
        _
      $region10: #{tpu_custom_call.1} parent=5 // pred_check_branch
        %167 = sbr.rel (%p164) target = $region12
      $region11: #{tpu_custom_call.1} parent=5 // pred_region
        %s168 = ssub.s32 %s18, 1
        // Predicated region
        $region13: #{tpu_custom_call.1} parent=11 // pred_check
          %p169 = pneg %p65
        $region14: #{tpu_custom_call.1} parent=11 // pred_check_branch
          %171 = sbr.rel (%p169) target = $region16
        $region15: #{tpu_custom_call.1} parent=11 // pred_region
          %s173 = ssub.s32 256, 256
          %174 = vsyncadd [#allocation6], %s173
          %s175 = sshll.u32 [#allocation5], 4
          %s176 = int_to_ptr.vmem [resolvable:$true] %s175
          %181 = dma.hbm_to_vmem [thread:$0]  %s1, 256, %s176, [#allocation6], 64, 64, 4
        $region16: #{tpu_custom_call.1} parent=11 // pred_fallthru
          _
        // Predicated region
        $region17: #{tpu_custom_call.1} parent=11 // pred_check
          %p182 = pneg %p86
        $region18: #{tpu_custom_call.1} parent=11 // pred_check_branch
          %184 = sbr.rel (%p182) target = $region20
        $region19: #{tpu_custom_call.1} parent=11 // pred_region
          _
        $region20: #{tpu_custom_call.1} parent=11 // pred_fallthru
          _
        // Predicated region
        $region21: #{tpu_custom_call.1} parent=11 // pred_check
          %p185 = pneg %p107
        $region22: #{tpu_custom_call.1} parent=11 // pred_check_branch
          %187 = sbr.rel (%p185) target = $region24
        $region23: #{tpu_custom_call.1} parent=11 // pred_region
          %s189 = ssub.s32 256, 256
          %190 = vsyncadd [#allocation6], %s189
          %s191 = sshll.u32 [#allocation7], 4
          %s192 = int_to_ptr.vmem [resolvable:$true] %s191
          %197 = dma.hbm_to_vmem [thread:$0]  %s3, 256, %s192, [#allocation6], 64, 64, 4
        $region24: #{tpu_custom_call.1} parent=11 // pred_fallthru
          _
        // Predicated region
        $region25: #{tpu_custom_call.1} parent=11 // pred_check
          %p198 = pneg %p128
        $region26: #{tpu_custom_call.1} parent=11 // pred_check_branch
          %200 = sbr.rel (%p198) target = $region28
        $region27: #{tpu_custom_call.1} parent=11 // pred_region
          _
        $region28: #{tpu_custom_call.1} parent=11 // pred_fallthru
          _
      $region12: #{tpu_custom_call.1} parent=5 // pred_fallthru
        _
      %p201 = scmp.lt.s32.totalorder %s18, 2
      // Predicated region
      $region29: #{tpu_custom_call.1} parent=5 // pred_check
        %p202 = pneg %p201
      $region30: #{tpu_custom_call.1} parent=5 // pred_check_branch
        %204 = sbr.rel (%p202) target = $region32
      $region31: #{tpu_custom_call.1} parent=5 // pred_region
        // Predicated region
        $region33: #{tpu_custom_call.1} parent=31 // pred_check
          %p205 = pneg %p38
        $region34: #{tpu_custom_call.1} parent=31 // pred_check_branch
          %207 = sbr.rel (%p205) target = $region36
        $region35: #{tpu_custom_call.1} parent=31 // pred_region
          %s208 = sand.u32 %s28, 1
          %s209 = scalar_lea.sflag [#allocation3], %s208
          %s210 = sand.u32 %s28, 1
          %s211 = smul.addr %s210, 8
          %s212 = scalar_lea.vmem [#allocation2], %s211
          %s214 = ssub.s32 128, 128
          %215 = vsyncadd %s209, %s214
          %s216 = smul.addr %s18, 128
          %s217 = scalar_lea.hbm %s0, %s216
          %s219 = sshll.u32 %s212, 4
          %s220 = int_to_ptr.vmem [resolvable:$true] %s219
          %222 = dma.hbm_to_vmem [thread:$0]  %s217, 128, %s220, %s209
        $region36: #{tpu_custom_call.1} parent=31 // pred_fallthru
          _
      $region32: #{tpu_custom_call.1} parent=5 // pred_fallthru
        _
      %p223 = scmp.le.s32.totalorder 1, %s18
      %p224 = scmp.lt.s32.totalorder %s18, 3
      %p225 = pnand %p223, %p224
      %p226 = pneg %p225
      // Predicated region
      $region37: #{tpu_custom_call.1} parent=5 // pred_check
        _
      $region38: #{tpu_custom_call.1} parent=5 // pred_check_branch
        %228 = sbr.rel (%p225) target = $region40
      $region39: #{tpu_custom_call.1} parent=5 // pred_region
        %s229 = ssub.s32 %s18, 1
        %s230 = sand.u32 %s31, 1
        %s231 = scalar_lea.sflag [#allocation3], %s230
        %s232 = sand.u32 %s31, 1
        %s233 = smul.addr %s232, 8
        %s234 = scalar_lea.vmem [#allocation2], %s233
        // Predicated region
        $region41: #{tpu_custom_call.1} parent=39 // pred_check
          %p235 = pneg %p44
        $region42: #{tpu_custom_call.1} parent=39 // pred_check_branch
          %237 = sbr.rel (%p235) target = $region44
        $region43: #{tpu_custom_call.1} parent=39 // pred_region
          %238 = dma.done %s231, 128
        $region44: #{tpu_custom_call.1} parent=39 // pred_fallthru
          _
        // Predicated region
        $region45: #{tpu_custom_call.1} parent=39 // pred_check
          %p239 = pneg %p65
        $region46: #{tpu_custom_call.1} parent=39 // pred_check_branch
          %241 = sbr.rel (%p239) target = $region48
        $region47: #{tpu_custom_call.1} parent=39 // pred_region
          %242 = dma.done [#allocation6], 256
        $region48: #{tpu_custom_call.1} parent=39 // pred_fallthru
          _
        // Predicated region
        $region49: #{tpu_custom_call.1} parent=39 // pred_check
          %p243 = pneg %p107
        $region50: #{tpu_custom_call.1} parent=39 // pred_check_branch
          %245 = sbr.rel (%p243) target = $region52
        $region51: #{tpu_custom_call.1} parent=39 // pred_region
          %246 = dma.done [#allocation6], 256
        $region52: #{tpu_custom_call.1} parent=39 // pred_fallthru
          _
        %s247 = sand.u32 %s31, 1
        %s248 = scalar_lea.sflag [#allocation3], %s247
        %s249 = sand.u32 %s31, 1
        %s250 = smul.addr %s249, 8
        %s251 = scalar_lea.vmem [#allocation2], %s250
        %p252 = pneg %p44
        %p253 = pneg %p41
        %p254 = pneg %p65
        %p255 = pneg %p62
        %p256 = pneg %p86
        %p257 = pneg %p83
        %p258 = pneg %p107
        %p259 = pneg %p104
        %p260 = pneg %p128
        %p261 = pneg %p125
        %p262 = pneg %p154
        %p263 = pneg %p151
        %s264 = sand.u32 %s141, 1
        %s265 = scalar_lea.sflag [#allocation4], %s264
        %s266 = sand.u32 %s141, 1
        %s267 = smul.addr %s266, 8
        %s268 = scalar_lea.vmem [#allocation8], %s267
        %v270 = vld [vmem:[%s234] sm:$0xff]
        %v271 = vpack.c.bf16 %v270, %v270
        %v272 = vld [vmem:[#allocation5] sm:$0xf]
        %v273 = vld [vmem:[#allocation5 + $0x4] sm:$0xf]
        %v274 = vld [vmem:[#allocation5 + $0x8] sm:$0xf]
        %v275 = vld [vmem:[#allocation5 + $0xc] sm:$0xf]
        %v276 = vld [vmem:[%s2] sm:$0x1]
        %v278 = vlaneseq
        %v279 = vshrl.u32 %v278, 7
        %v280 = vsub.s32 0, %v279
        %v281 = vrot.slane %v276, %v280
        %v287 = vunpack.c.l.b16 %v272
        %v288 = vunpack.c.l.b16 %v273
        %v289 = vunpack.c.l.b16 %v274
        %v290 = vunpack.c.l.b16 %v275
        %v291 = vpack.c.b16 %v288, %v287
        %v292 = vpack.c.b16 %v290, %v289
        %vm295 = vcmask 261120
        %v297 = vsel %vm295, %v271, 0
        %299 = vmatprep.subr.bf16.mxu0 0
        %300 = vmatpush1.bf16.msra.mxu0 0
        %301 = vmatprep.subr.bf16.mxu0 0
        %302 = vmatpush1.bf16.msra.mxu0 0
        %303 = vmatprep.subr.bf16.mxu0 0
        %304 = vmatpush1.bf16.msra.mxu0 0
        %305 = vmatprep.subr.bf16.mxu0 0
        %306 = vmatpush1.bf16.msra.mxu0 0
        %307 = vmatprep.subr.bf16.mxu0 0
        %308 = vmatpush1.bf16.msra.mxu0 0
        %309 = vmatprep.subr.bf16.mxu0 0
        %310 = vmatpush1.bf16.msra.mxu0 0
        %311 = vmatprep.subr.bf16.mxu0 0
        %312 = vmatpush1.bf16.msra.mxu0 %v292
        %313 = vmatprep.subr.bf16.mxu0 0
        %314 = vmatpush1.bf16.msra.mxu0 %v291
        %315 = vmatprep.subr.bf16.mxu0 0
        %316 = vmatpush2.bf16.msra.mxu0 0
        %317 = vmatprep.subr.bf16.mxu0 0
        %318 = vmatpush2.bf16.msra.mxu0 0
        %319 = vmatprep.subr.bf16.mxu0 0
        %320 = vmatpush2.bf16.msra.mxu0 0
        %321 = vmatprep.subr.bf16.mxu0 0
        %322 = vmatpush2.bf16.msra.mxu0 0
        %323 = vmatprep.subr.bf16.mxu0 0
        %324 = vmatpush2.bf16.msra.mxu0 0
        %325 = vmatprep.subr.bf16.mxu0 0
        %326 = vmatpush2.bf16.msra.mxu0 0
        %327 = vmatprep.subr.bf16.mxu0 0
        %328 = vmatpush2.bf16.msra.mxu0 0
        %329 = vmatprep.subr.bf16.mxu0 0
        %330 = vmatpush2.bf16.msra.mxu0 0
        %331 = vmatprep.mubr.bf16.mxu0 0
        %332 = vmatmul.mubr.bf16.gmra.mxu0 %v297
        %v333 = vpop.f32.mrf.mxu0
        %v334 = vadd.f32 %v281, %v333
        %v335 = vpop.f32.mrf.mxu0
        %v336 = vpop.f32.mrf.mxu0
        %v337 = vpop.f32.mrf.mxu0
        %338 = vdwg.mxu0
        %v339 = vpack.c.bf16 %v334, %v334
        %341 = vrot.lane.b32.xlu0 %v339, 96
        %v342 = vpop.permute.xlu0 %341
        %vm343 = vcmask 64512
        %v345 = vsel %vm343, %v339, 0
        %v348 = vsel %vm343, %v342, 0
        %350 = vmatprep.subr.bf16.mxu0 0
        %351 = vmatpush1.bf16.xpose.msra.mxu0 0
        %352 = vmatprep.subr.bf16.mxu0 0
        %353 = vmatpush1.bf16.xpose.msra.mxu0 0
        %354 = vmatprep.subr.bf16.mxu0 0
        %355 = vmatpush1.bf16.xpose.msra.mxu0 0
        %356 = vmatprep.subr.bf16.mxu0 0
        %357 = vmatpush1.bf16.xpose.msra.mxu0 0
        %358 = vmatprep.subr.bf16.mxu0 0
        %359 = vmatpush1.bf16.xpose.msra.mxu0 0
        %360 = vmatprep.subr.bf16.mxu0 0
        %361 = vmatpush1.bf16.xpose.msra.mxu0 0
        %362 = vmatprep.subr.bf16.mxu0 0
        %363 = vmatpush1.bf16.xpose.msra.mxu0 0
        %364 = vmatprep.subr.bf16.mxu0 0
        %365 = vmatpush1.bf16.xpose.msra.mxu0 %v348
        %366 = vmatprep.subr.bf16.mxu0 0
        %367 = vmatpush2.bf16.xpose.msra.mxu0 0
        %368 = vmatprep.subr.bf16.mxu0 0
        %369 = vmatpush2.bf16.xpose.msra.mxu0 0
        %370 = vmatprep.subr.bf16.mxu0 0
        %371 = vmatpush2.bf16.xpose.msra.mxu0 0
        %372 = vmatprep.subr.bf16.mxu0 0
        %373 = vmatpush2.bf16.xpose.msra.mxu0 0
        %374 = vmatprep.subr.bf16.mxu0 0
        %375 = vmatpush2.bf16.xpose.msra.mxu0 0
        %376 = vmatprep.subr.bf16.mxu0 0
        %377 = vmatpush2.bf16.xpose.msra.mxu0 0
        %378 = vmatprep.subr.bf16.mxu0 0
        %379 = vmatpush2.bf16.xpose.msra.mxu0 0
        %380 = vmatprep.subr.bf16.mxu0 0
        %381 = vmatpush2.bf16.xpose.msra.mxu0 0
        %382 = vmatprep.mubr.bf16.mxu0 0
        %383 = vmatmul.mubr.bf16.gmra.mxu0 %v345
        %v384 = vpop.f32.mrf.mxu0
        %v385 = vadd.f32 0.0, %v384
        %v386 = vpop.f32.mrf.mxu0
        %v387 = vpop.f32.mrf.mxu0
        %v388 = vpop.f32.mrf.mxu0
        %389 = vdwg.mxu0
        %v390 = vsel %vm343, %v385, -inf
        %391 = vmax.xlane.f32.xlu0 %v390
        %v392 = vpop.xlane.xlu0 %391
        %v393 = vsub.f32 %v385, %v392
        %v394 = vmul.f32 %v393, 1.442695
        %v395 = vpow.pop %v394
        %v396 = vsel %vm343, %v395, 0.0
        %397 = vadd.xlane.f32.xlu0 %v396
        %v398 = vpop.xlane.xlu0 %397
        %v399 = vpack.c.bf16 %v395, %v395
        %400 = vrot.lane.b32.xlu0 %v339, 64
        %v401 = vpop.permute.xlu0 %400
        %v403 = vsel %vm343, %v399, 0
        %vm405 = vcmask 1043456
        %v407 = vsel %vm405, %v401, 0
        %409 = vmatprep.subr.bf16.mxu0 0
        %410 = vmatpush1.bf16.msra.mxu0 0
        %411 = vmatprep.subr.bf16.mxu0 0
        %412 = vmatpush1.bf16.msra.mxu0 0
        %413 = vmatprep.subr.bf16.mxu0 0
        %414 = vmatpush1.bf16.msra.mxu0 0
        %415 = vmatprep.subr.bf16.mxu0 0
        %416 = vmatpush1.bf16.msra.mxu0 0
        %417 = vmatprep.subr.bf16.mxu0 0
        %418 = vmatpush1.bf16.msra.mxu0 0
        %419 = vmatprep.subr.bf16.mxu0 0
        %420 = vmatpush1.bf16.msra.mxu0 0
        %421 = vmatprep.subr.bf16.mxu0 0
        %422 = vmatpush1.bf16.msra.mxu0 0
        %423 = vmatprep.subr.bf16.mxu0 0
        %424 = vmatpush1.bf16.msra.mxu0 %v407
        %425 = vmatprep.subr.bf16.mxu0 0
        %426 = vmatpush2.bf16.msra.mxu0 0
        %427 = vmatprep.subr.bf16.mxu0 0
        %428 = vmatpush2.bf16.msra.mxu0 0
        %429 = vmatprep.subr.bf16.mxu0 0
        %430 = vmatpush2.bf16.msra.mxu0 0
        %431 = vmatprep.subr.bf16.mxu0 0
        %432 = vmatpush2.bf16.msra.mxu0 0
        %433 = vmatprep.subr.bf16.mxu0 0
        %434 = vmatpush2.bf16.msra.mxu0 0
        %435 = vmatprep.subr.bf16.mxu0 0
        %436 = vmatpush2.bf16.msra.mxu0 0
        %437 = vmatprep.subr.bf16.mxu0 0
        %438 = vmatpush2.bf16.msra.mxu0 0
        %439 = vmatprep.subr.bf16.mxu0 0
        %440 = vmatpush2.bf16.msra.mxu0 0
        %441 = vmatprep.mubr.bf16.mxu0 0
        %442 = vmatmul.mubr.bf16.gmra.mxu0 %v403
        %v443 = vpop.f32.mrf.mxu0
        %v444 = vadd.f32 0.0, %v443
        %v445 = vpop.f32.mrf.mxu0
        %v446 = vpop.f32.mrf.mxu0
        %v447 = vpop.f32.mrf.mxu0
        %448 = vdwg.mxu0
        %v449 = vrcp.pop %v398
        %v450 = vmul.f32 %v444, %v449
        %451 = vrot.lane.b32.xlu0 %v339, 120
        %v452 = vpop.permute.xlu0 %451
        %453 = vrot.lane.b32.xlu0 %v339, 88
        %v454 = vpop.permute.xlu0 %453
        %v456 = vsel %vm343, %v452, 0
        %v459 = vsel %vm343, %v454, 0
        %461 = vmatprep.subr.bf16.mxu0 0
        %462 = vmatpush1.bf16.xpose.msra.mxu0 0
        %463 = vmatprep.subr.bf16.mxu0 0
        %464 = vmatpush1.bf16.xpose.msra.mxu0 0
        %465 = vmatprep.subr.bf16.mxu0 0
        %466 = vmatpush1.bf16.xpose.msra.mxu0 0
        %467 = vmatprep.subr.bf16.mxu0 0
        %468 = vmatpush1.bf16.xpose.msra.mxu0 0
        %469 = vmatprep.subr.bf16.mxu0 0
        %470 = vmatpush1.bf16.xpose.msra.mxu0 0
        %471 = vmatprep.subr.bf16.mxu0 0
        %472 = vmatpush1.bf16.xpose.msra.mxu0 0
        %473 = vmatprep.subr.bf16.mxu0 0
        %474 = vmatpush1.bf16.xpose.msra.mxu0 0
        %475 = vmatprep.subr.bf16.mxu0 0
        %476 = vmatpush1.bf16.xpose.msra.mxu0 %v459
        %477 = vmatprep.subr.bf16.mxu0 0
        %478 = vmatpush2.bf16.xpose.msra.mxu0 0
        %479 = vmatprep.subr.bf16.mxu0 0
        %480 = vmatpush2.bf16.xpose.msra.mxu0 0
        %481 = vmatprep.subr.bf16.mxu0 0
        %482 = vmatpush2.bf16.xpose.msra.mxu0 0
        %483 = vmatprep.subr.bf16.mxu0 0
        %484 = vmatpush2.bf16.xpose.msra.mxu0 0
        %485 = vmatprep.subr.bf16.mxu0 0
        %486 = vmatpush2.bf16.xpose.msra.mxu0 0
        %487 = vmatprep.subr.bf16.mxu0 0
        %488 = vmatpush2.bf16.xpose.msra.mxu0 0
        %489 = vmatprep.subr.bf16.mxu0 0
        %490 = vmatpush2.bf16.xpose.msra.mxu0 0
        %491 = vmatprep.subr.bf16.mxu0 0
        %492 = vmatpush2.bf16.xpose.msra.mxu0 0
        %493 = vmatprep.mubr.bf16.mxu0 0
        %494 = vmatmul.mubr.bf16.gmra.mxu0 %v456
        %v495 = vpop.f32.mrf.mxu0
        %v496 = vadd.f32 0.0, %v495
        %v497 = vpop.f32.mrf.mxu0
        %v498 = vpop.f32.mrf.mxu0
        %v499 = vpop.f32.mrf.mxu0
        %500 = vdwg.mxu0
        %v501 = vsel %vm343, %v496, -inf
        %502 = vmax.xlane.f32.xlu0 %v501
        %v503 = vpop.xlane.xlu0 %502
        %v504 = vsub.f32 %v496, %v503
        %v505 = vmul.f32 %v504, 1.442695
        %v506 = vpow.pop %v505
        %v507 = vsel %vm343, %v506, 0.0
        %508 = vadd.xlane.f32.xlu0 %v507
        %v509 = vpop.xlane.xlu0 %508
        %v510 = vpack.c.bf16 %v506, %v506
        %511 = vrot.lane.b32.xlu0 %v339, 56
        %v512 = vpop.permute.xlu0 %511
        %v514 = vsel %vm343, %v510, 0
        %v517 = vsel %vm405, %v512, 0
        %519 = vmatprep.subr.bf16.mxu0 0
        %520 = vmatpush1.bf16.msra.mxu0 0
        %521 = vmatprep.subr.bf16.mxu0 0
        %522 = vmatpush1.bf16.msra.mxu0 0
        %523 = vmatprep.subr.bf16.mxu0 0
        %524 = vmatpush1.bf16.msra.mxu0 0
        %525 = vmatprep.subr.bf16.mxu0 0
        %526 = vmatpush1.bf16.msra.mxu0 0
        %527 = vmatprep.subr.bf16.mxu0 0
        %528 = vmatpush1.bf16.msra.mxu0 0
        %529 = vmatprep.subr.bf16.mxu0 0
        %530 = vmatpush1.bf16.msra.mxu0 0
        %531 = vmatprep.subr.bf16.mxu0 0
        %532 = vmatpush1.bf16.msra.mxu0 0
        %533 = vmatprep.subr.bf16.mxu0 0
        %534 = vmatpush1.bf16.msra.mxu0 %v517
        %535 = vmatprep.subr.bf16.mxu0 0
        %536 = vmatpush2.bf16.msra.mxu0 0
        %537 = vmatprep.subr.bf16.mxu0 0
        %538 = vmatpush2.bf16.msra.mxu0 0
        %539 = vmatprep.subr.bf16.mxu0 0
        %540 = vmatpush2.bf16.msra.mxu0 0
        %541 = vmatprep.subr.bf16.mxu0 0
        %542 = vmatpush2.bf16.msra.mxu0 0
        %543 = vmatprep.subr.bf16.mxu0 0
        %544 = vmatpush2.bf16.msra.mxu0 0
        %545 = vmatprep.subr.bf16.mxu0 0
        %546 = vmatpush2.bf16.msra.mxu0 0
        %547 = vmatprep.subr.bf16.mxu0 0
        %548 = vmatpush2.bf16.msra.mxu0 0
        %549 = vmatprep.subr.bf16.mxu0 0
        %550 = vmatpush2.bf16.msra.mxu0 0
        %551 = vmatprep.mubr.bf16.mxu0 0
        %552 = vmatmul.mubr.bf16.gmra.mxu0 %v514
        %v553 = vpop.f32.mrf.mxu0
        %v554 = vadd.f32 0.0, %v553
        %v555 = vpop.f32.mrf.mxu0
        %v556 = vpop.f32.mrf.mxu0
        %v557 = vpop.f32.mrf.mxu0
        %558 = vdwg.mxu0
        %v559 = vrcp.pop %v509
        %v560 = vmul.f32 %v554, %v559
        %561 = vrot.lane.b32.xlu0 %v339, 112
        %v562 = vpop.permute.xlu0 %561
        %563 = vrot.lane.b32.xlu0 %v339, 80
        %v564 = vpop.permute.xlu0 %563
        %v566 = vsel %vm343, %v562, 0
        %v569 = vsel %vm343, %v564, 0
        %571 = vmatprep.subr.bf16.mxu0 0
        %572 = vmatpush1.bf16.xpose.msra.mxu0 0
        %573 = vmatprep.subr.bf16.mxu0 0
        %574 = vmatpush1.bf16.xpose.msra.mxu0 0
        %575 = vmatprep.subr.bf16.mxu0 0
        %576 = vmatpush1.bf16.xpose.msra.mxu0 0
        %577 = vmatprep.subr.bf16.mxu0 0
        %578 = vmatpush1.bf16.xpose.msra.mxu0 0
        %579 = vmatprep.subr.bf16.mxu0 0
        %580 = vmatpush1.bf16.xpose.msra.mxu0 0
        %581 = vmatprep.subr.bf16.mxu0 0
        %582 = vmatpush1.bf16.xpose.msra.mxu0 0
        %583 = vmatprep.subr.bf16.mxu0 0
        %584 = vmatpush1.bf16.xpose.msra.mxu0 0
        %585 = vmatprep.subr.bf16.mxu0 0
        %586 = vmatpush1.bf16.xpose.msra.mxu0 %v569
        %587 = vmatprep.subr.bf16.mxu0 0
        %588 = vmatpush2.bf16.xpose.msra.mxu0 0
        %589 = vmatprep.subr.bf16.mxu0 0
        %590 = vmatpush2.bf16.xpose.msra.mxu0 0
        %591 = vmatprep.subr.bf16.mxu0 0
        %592 = vmatpush2.bf16.xpose.msra.mxu0 0
        %593 = vmatprep.subr.bf16.mxu0 0
        %594 = vmatpush2.bf16.xpose.msra.mxu0 0
        %595 = vmatprep.subr.bf16.mxu0 0
        %596 = vmatpush2.bf16.xpose.msra.mxu0 0
        %597 = vmatprep.subr.bf16.mxu0 0
        %598 = vmatpush2.bf16.xpose.msra.mxu0 0
        %599 = vmatprep.subr.bf16.mxu0 0
        %600 = vmatpush2.bf16.xpose.msra.mxu0 0
        %601 = vmatprep.subr.bf16.mxu0 0
        %602 = vmatpush2.bf16.xpose.msra.mxu0 0
        %603 = vmatprep.mubr.bf16.mxu0 0
        %604 = vmatmul.mubr.bf16.gmra.mxu0 %v566
        %v605 = vpop.f32.mrf.mxu0
        %v606 = vadd.f32 0.0, %v605
        %v607 = vpop.f32.mrf.mxu0
        %v608 = vpop.f32.mrf.mxu0
        %v609 = vpop.f32.mrf.mxu0
        %610 = vdwg.mxu0
        %v611 = vsel %vm343, %v606, -inf
        %612 = vmax.xlane.f32.xlu0 %v611
        %v613 = vpop.xlane.xlu0 %612
        %v614 = vsub.f32 %v606, %v613
        %v615 = vmul.f32 %v614, 1.442695
        %v616 = vpow.pop %v615
        %v617 = vsel %vm343, %v616, 0.0
        %618 = vadd.xlane.f32.xlu0 %v617
        %v619 = vpop.xlane.xlu0 %618
        %v620 = vpack.c.bf16 %v616, %v616
        %621 = vrot.lane.b32.xlu0 %v339, 48
        %v622 = vpop.permute.xlu0 %621
        %v624 = vsel %vm343, %v620, 0
        %v627 = vsel %vm405, %v622, 0
        %629 = vmatprep.subr.bf16.mxu0 0
        %630 = vmatpush1.bf16.msra.mxu0 0
        %631 = vmatprep.subr.bf16.mxu0 0
        %632 = vmatpush1.bf16.msra.mxu0 0
        %633 = vmatprep.subr.bf16.mxu0 0
        %634 = vmatpush1.bf16.msra.mxu0 0
        %635 = vmatprep.subr.bf16.mxu0 0
        %636 = vmatpush1.bf16.msra.mxu0 0
        %637 = vmatprep.subr.bf16.mxu0 0
        %638 = vmatpush1.bf16.msra.mxu0 0
        %639 = vmatprep.subr.bf16.mxu0 0
        %640 = vmatpush1.bf16.msra.mxu0 0
        %641 = vmatprep.subr.bf16.mxu0 0
        %642 = vmatpush1.bf16.msra.mxu0 0
        %643 = vmatprep.subr.bf16.mxu0 0
        %644 = vmatpush1.bf16.msra.mxu0 %v627
        %645 = vmatprep.subr.bf16.mxu0 0
        %646 = vmatpush2.bf16.msra.mxu0 0
        %647 = vmatprep.subr.bf16.mxu0 0
        %648 = vmatpush2.bf16.msra.mxu0 0
        %649 = vmatprep.subr.bf16.mxu0 0
        %650 = vmatpush2.bf16.msra.mxu0 0
        %651 = vmatprep.subr.bf16.mxu0 0
        %652 = vmatpush2.bf16.msra.mxu0 0
        %653 = vmatprep.subr.bf16.mxu0 0
        %654 = vmatpush2.bf16.msra.mxu0 0
        %655 = vmatprep.subr.bf16.mxu0 0
        %656 = vmatpush2.bf16.msra.mxu0 0
        %657 = vmatprep.subr.bf16.mxu0 0
        %658 = vmatpush2.bf16.msra.mxu0 0
        %659 = vmatprep.subr.bf16.mxu0 0
        %660 = vmatpush2.bf16.msra.mxu0 0
        %661 = vmatprep.mubr.bf16.mxu0 0
        %662 = vmatmul.mubr.bf16.gmra.mxu0 %v624
        %v663 = vpop.f32.mrf.mxu0
        %v664 = vadd.f32 0.0, %v663
        %v665 = vpop.f32.mrf.mxu0
        %v666 = vpop.f32.mrf.mxu0
        %v667 = vpop.f32.mrf.mxu0
        %668 = vdwg.mxu0
        %v669 = vrcp.pop %v619
        %v670 = vmul.f32 %v664, %v669
        %671 = vrot.lane.b32.xlu0 %v339, 104
        %v672 = vpop.permute.xlu0 %671
        %673 = vrot.lane.b32.xlu0 %v339, 72
        %v674 = vpop.permute.xlu0 %673
        %v676 = vsel %vm343, %v672, 0
        %v679 = vsel %vm343, %v674, 0
        %681 = vmatprep.subr.bf16.mxu0 0
        %682 = vmatpush1.bf16.xpose.msra.mxu0 0
        %683 = vmatprep.subr.bf16.mxu0 0
        %684 = vmatpush1.bf16.xpose.msra.mxu0 0
        %685 = vmatprep.subr.bf16.mxu0 0
        %686 = vmatpush1.bf16.xpose.msra.mxu0 0
        %687 = vmatprep.subr.bf16.mxu0 0
        %688 = vmatpush1.bf16.xpose.msra.mxu0 0
        %689 = vmatprep.subr.bf16.mxu0 0
        %690 = vmatpush1.bf16.xpose.msra.mxu0 0
        %691 = vmatprep.subr.bf16.mxu0 0
        %692 = vmatpush1.bf16.xpose.msra.mxu0 0
        %693 = vmatprep.subr.bf16.mxu0 0
        %694 = vmatpush1.bf16.xpose.msra.mxu0 0
        %695 = vmatprep.subr.bf16.mxu0 0
        %696 = vmatpush1.bf16.xpose.msra.mxu0 %v679
        %697 = vmatprep.subr.bf16.mxu0 0
        %698 = vmatpush2.bf16.xpose.msra.mxu0 0
        %699 = vmatprep.subr.bf16.mxu0 0
        %700 = vmatpush2.bf16.xpose.msra.mxu0 0
        %701 = vmatprep.subr.bf16.mxu0 0
        %702 = vmatpush2.bf16.xpose.msra.mxu0 0
        %703 = vmatprep.subr.bf16.mxu0 0
        %704 = vmatpush2.bf16.xpose.msra.mxu0 0
        %705 = vmatprep.subr.bf16.mxu0 0
        %706 = vmatpush2.bf16.xpose.msra.mxu0 0
        %707 = vmatprep.subr.bf16.mxu0 0
        %708 = vmatpush2.bf16.xpose.msra.mxu0 0
        %709 = vmatprep.subr.bf16.mxu0 0
        %710 = vmatpush2.bf16.xpose.msra.mxu0 0
        %711 = vmatprep.subr.bf16.mxu0 0
        %712 = vmatpush2.bf16.xpose.msra.mxu0 0
        %713 = vmatprep.mubr.bf16.mxu0 0
        %714 = vmatmul.mubr.bf16.gmra.mxu0 %v676
        %v715 = vpop.f32.mrf.mxu0
        %v716 = vadd.f32 0.0, %v715
        %v717 = vpop.f32.mrf.mxu0
        %v718 = vpop.f32.mrf.mxu0
        %v719 = vpop.f32.mrf.mxu0
        %720 = vdwg.mxu0
        %v721 = vsel %vm343, %v716, -inf
        %722 = vmax.xlane.f32.xlu0 %v721
        %v723 = vpop.xlane.xlu0 %722
        %v724 = vsub.f32 %v716, %v723
        %v725 = vmul.f32 %v724, 1.442695
        %v726 = vpow.pop %v725
        %v727 = vsel %vm343, %v726, 0.0
        %728 = vadd.xlane.f32.xlu0 %v727
        %v729 = vpop.xlane.xlu0 %728
        %v730 = vpack.c.bf16 %v726, %v726
        %731 = vrot.lane.b32.xlu0 %v339, 40
        %v732 = vpop.permute.xlu0 %731
        %v734 = vsel %vm343, %v730, 0
        %v737 = vsel %vm405, %v732, 0
        %739 = vmatprep.subr.bf16.mxu0 0
        %740 = vmatpush1.bf16.msra.mxu0 0
        %741 = vmatprep.subr.bf16.mxu0 0
        %742 = vmatpush1.bf16.msra.mxu0 0
        %743 = vmatprep.subr.bf16.mxu0 0
        %744 = vmatpush1.bf16.msra.mxu0 0
        %745 = vmatprep.subr.bf16.mxu0 0
        %746 = vmatpush1.bf16.msra.mxu0 0
        %747 = vmatprep.subr.bf16.mxu0 0
        %748 = vmatpush1.bf16.msra.mxu0 0
        %749 = vmatprep.subr.bf16.mxu0 0
        %750 = vmatpush1.bf16.msra.mxu0 0
        %751 = vmatprep.subr.bf16.mxu0 0
        %752 = vmatpush1.bf16.msra.mxu0 0
        %753 = vmatprep.subr.bf16.mxu0 0
        %754 = vmatpush1.bf16.msra.mxu0 %v737
        %755 = vmatprep.subr.bf16.mxu0 0
        %756 = vmatpush2.bf16.msra.mxu0 0
        %757 = vmatprep.subr.bf16.mxu0 0
        %758 = vmatpush2.bf16.msra.mxu0 0
        %759 = vmatprep.subr.bf16.mxu0 0
        %760 = vmatpush2.bf16.msra.mxu0 0
        %761 = vmatprep.subr.bf16.mxu0 0
        %762 = vmatpush2.bf16.msra.mxu0 0
        %763 = vmatprep.subr.bf16.mxu0 0
        %764 = vmatpush2.bf16.msra.mxu0 0
        %765 = vmatprep.subr.bf16.mxu0 0
        %766 = vmatpush2.bf16.msra.mxu0 0
        %767 = vmatprep.subr.bf16.mxu0 0
        %768 = vmatpush2.bf16.msra.mxu0 0
        %769 = vmatprep.subr.bf16.mxu0 0
        %770 = vmatpush2.bf16.msra.mxu0 0
        %771 = vmatprep.mubr.bf16.mxu0 0
        %772 = vmatmul.mubr.bf16.gmra.mxu0 %v734
        %v773 = vpop.f32.mrf.mxu0
        %v774 = vadd.f32 0.0, %v773
        %v775 = vpop.f32.mrf.mxu0
        %v776 = vpop.f32.mrf.mxu0
        %v777 = vpop.f32.mrf.mxu0
        %778 = vdwg.mxu0
        %v779 = vrcp.pop %v729
        %v780 = vmul.f32 %v774, %v779
        %782 = vrot.lane.b32.xlu0 %v560, 8
        %v783 = vpop.permute.xlu0 %782
        %786 = vrot.lane.b32.xlu0 %v670, 16
        %v787 = vpop.permute.xlu0 %786
        %790 = vrot.lane.b32.xlu0 %v780, 24
        %v791 = vpop.permute.xlu0 %790
        %v793 = vsel %vm343, %v450, %v783
        %vm794 = vcmask 130048
        %v795 = vsel %vm794, %v793, %v787
        %vm796 = vcmask 195584
        %v797 = vsel %vm796, %v795, %v791
        %v798 = vpack.c.bf16 %v797, %v797
        %v799 = vld [vmem:[#allocation7] sm:$0xf]
        %v800 = vld [vmem:[#allocation7 + $0x4] sm:$0xf]
        %v801 = vld [vmem:[#allocation7 + $0x8] sm:$0xf]
        %v802 = vld [vmem:[#allocation7 + $0xc] sm:$0xf]
        %v803 = vld [vmem:[%s4] sm:$0x1]
        %v805 = vlaneseq
        %v806 = vshrl.u32 %v805, 7
        %v807 = vsub.s32 0, %v806
        %v808 = vrot.slane %v803, %v807
        %v814 = vunpack.c.l.b16 %v799
        %v815 = vunpack.c.l.b16 %v800
        %v816 = vunpack.c.l.b16 %v801
        %v817 = vunpack.c.l.b16 %v802
        %v818 = vpack.c.b16 %v815, %v814
        %v819 = vpack.c.b16 %v817, %v816
        %v823 = vsel %vm295, %v798, 0
        %825 = vmatprep.subr.bf16.mxu0 0
        %826 = vmatpush1.bf16.msra.mxu0 0
        %827 = vmatprep.subr.bf16.mxu0 0
        %828 = vmatpush1.bf16.msra.mxu0 0
        %829 = vmatprep.subr.bf16.mxu0 0
        %830 = vmatpush1.bf16.msra.mxu0 0
        %831 = vmatprep.subr.bf16.mxu0 0
        %832 = vmatpush1.bf16.msra.mxu0 0
        %833 = vmatprep.subr.bf16.mxu0 0
        %834 = vmatpush1.bf16.msra.mxu0 0
        %835 = vmatprep.subr.bf16.mxu0 0
        %836 = vmatpush1.bf16.msra.mxu0 0
        %837 = vmatprep.subr.bf16.mxu0 0
        %838 = vmatpush1.bf16.msra.mxu0 %v819
        %839 = vmatprep.subr.bf16.mxu0 0
        %840 = vmatpush1.bf16.msra.mxu0 %v818
        %841 = vmatprep.subr.bf16.mxu0 0
        %842 = vmatpush2.bf16.msra.mxu0 0
        %843 = vmatprep.subr.bf16.mxu0 0
        %844 = vmatpush2.bf16.msra.mxu0 0
        %845 = vmatprep.subr.bf16.mxu0 0
        %846 = vmatpush2.bf16.msra.mxu0 0
        %847 = vmatprep.subr.bf16.mxu0 0
        %848 = vmatpush2.bf16.msra.mxu0 0
        %849 = vmatprep.subr.bf16.mxu0 0
        %850 = vmatpush2.bf16.msra.mxu0 0
        %851 = vmatprep.subr.bf16.mxu0 0
        %852 = vmatpush2.bf16.msra.mxu0 0
        %853 = vmatprep.subr.bf16.mxu0 0
        %854 = vmatpush2.bf16.msra.mxu0 0
        %855 = vmatprep.subr.bf16.mxu0 0
        %856 = vmatpush2.bf16.msra.mxu0 0
        %857 = vmatprep.mubr.bf16.mxu0 0
        %858 = vmatmul.mubr.bf16.gmra.mxu0 %v823
        %v859 = vpop.f32.mrf.mxu0
        %v860 = vadd.f32 %v808, %v859
        %v861 = vpop.f32.mrf.mxu0
        %v862 = vpop.f32.mrf.mxu0
        %v863 = vpop.f32.mrf.mxu0
        %864 = vdwg.mxu0
        %865 = vst.msk [vmem:[%s268] sm:$0xff] %vm295, %v860
        %s866 = sand.u32 %s141, 1
        %s867 = scalar_lea.sflag [#allocation4], %s866
        %s868 = sand.u32 %s141, 1
        %s869 = smul.addr %s868, 8
        %s870 = scalar_lea.vmem [#allocation8], %s869
        // Predicated region
        $region53: #{tpu_custom_call.1} parent=39 // pred_check
          %p871 = pneg %p151
        $region54: #{tpu_custom_call.1} parent=39 // pred_check_branch
          %873 = sbr.rel (%p871) target = $region56
        $region55: #{tpu_custom_call.1} parent=39 // pred_region
          %s875 = ssub.s32 128, 128
          %876 = vsyncadd %s867, %s875
          %s877 = smul.addr %s23, 128
          %s878 = scalar_lea.hbm %s5, %s877
          %s880 = sshll.u32 %s870, 4
          %s881 = int_to_ptr.vmem [resolvable:$true] %s880
          %883 = dma.vmem_to_hbm [thread:$0]  %s881, 128, %s878, %s867
        $region56: #{tpu_custom_call.1} parent=39 // pred_fallthru
          _
      $region40: #{tpu_custom_call.1} parent=5 // pred_fallthru
        _
      %p884 = scmp.le.s32.totalorder 2, %s18
      // Predicated region
      $region57: #{tpu_custom_call.1} parent=5 // pred_check
        %p885 = pneg %p884
      $region58: #{tpu_custom_call.1} parent=5 // pred_check_branch
        %887 = sbr.rel (%p885) target = $region60
      $region59: #{tpu_custom_call.1} parent=5 // pred_region
        %s888 = ssub.s32 %s18, 2
        // Predicated region
        $region61: #{tpu_custom_call.1} parent=59 // pred_check
          %p889 = pneg %p157
        $region62: #{tpu_custom_call.1} parent=59 // pred_check_branch
          %891 = sbr.rel (%p889) target = $region64
        $region63: #{tpu_custom_call.1} parent=59 // pred_region
          %s892 = sand.u32 %s142, 1
          %s893 = scalar_lea.sflag [#allocation4], %s892
          %s894 = sand.u32 %s142, 1
          %s895 = smul.addr %s894, 8
          %s896 = scalar_lea.vmem [#allocation8], %s895
          %897 = dma.done %s893, 128
        $region64: #{tpu_custom_call.1} parent=59 // pred_fallthru
          _
      $region60: #{tpu_custom_call.1} parent=5 // pred_fallthru
        _
    $region6: #{tpu_custom_call.1} parent=1 // loop_footer
      %s22 = sadd.s32 1, %s18
    $region7: #{tpu_custom_call.1} parent=1 // loop_footer_branch
      %17 = sbr.rel target = $region3
    $region8: #{tpu_custom_call.1} parent=1 // loop_exit
      _
    %898 = vsyncpa [#allocation3], 1
    %s899 = scalar_lea.sflag [#allocation3], 1
    %900 = vsyncpa %s899, 1
    %901 = vsyncpa [#allocation6], 1
    %902 = vsyncpa [#allocation4], 1
    %s903 = scalar_lea.sflag [#allocation4], 1
    %904 = vsyncpa %s903, 1

// kernel: tpu_custom_call.1
$region0: #{tpu_custom_call.1}
  #allocation0 [shape = 'u32[]', space=smem, size = 0x4, offset = 0x4, fixed_abs, tag = 'smem constant byte address 0x4 - core index']
  #allocation1 [shape = 'u32[144,128]{1,0:T(1,128)}', space=vmem, size = 0x12000, scoped, tag = 'internal scratch']
  %s0 = inlined_call_operand.hbm [shape: f32[16,32], index: 0, kind: input, shape index: {}]
  %s1 = inlined_call_operand.hbm [shape: bf16[32,96], index: 1, kind: input, shape index: {}]
  %s2 = inlined_call_operand.vmem [shape: f32[1,96], index: 2, kind: input, shape index: {}]
  %s3 = inlined_call_operand.hbm [shape: bf16[32,32], index: 3, kind: input, shape index: {}]
  %s4 = inlined_call_operand.vmem [shape: f32[1,32], index: 4, kind: input, shape index: {}]
  %s5 = inlined_call_operand.hbm [shape: f32[16,32], index: 5, kind: output, shape index: {}]
  %s6 = sld [smem:[#allocation0]]
  $region65: #{tpu_custom_call.1} parent=0
    _
  %s8 = ssub.s32 1, %s6
  %s9 = scalar_select 0, %s8, %s6
  $region1: #{tpu_custom_call.1} parent=0
    #allocation2 [shape = 'u8[8192]{0}', space=vmem, size = 0x2000, scoped, tag = 'input window, operand 0']
    #allocation3 [shape = 's32[2]{0}', space=sflag, size = 0x8, scoped, tag = 'scoped memory for tpu_custom_call.1']
    #allocation4 [shape = 's32[2]{0}', space=sflag, size = 0x8, scoped, tag = 'scoped memory for tpu_custom_call.1']
    #allocation5 [shape = 'u8[8192]{0}', space=vmem, size = 0x2000, scoped, tag = 'input window, operand 1, single buffered']
    #allocation6 [shape = 's32[1]{0}', space=sflag, size = 0x4, scoped, tag = 'scoped memory for tpu_custom_call.1']
    #allocation7 [shape = 'u8[8192]{0}', space=vmem, size = 0x2000, scoped, tag = 'input window, operand 3, single buffered']
    #allocation8 [shape = 'u8[8192]{0}', space=vmem, size = 0x2000, scoped, tag = 'output window, operand 0']
    %10 = vsyncpa [#allocation3], 0
    %s11 = scalar_lea.sflag [#allocation3], 1
    %12 = vsyncpa %s11, 0
    %13 = vsyncpa [#allocation6], 0
    %14 = vsyncpa [#allocation4], 0
    %s15 = scalar_lea.sflag [#allocation4], 1
    %16 = vsyncpa %s15, 0
    loop: start=0, step=1, limit=4
    $region2: #{tpu_custom_call.1} parent=1 // loop_pre_header
      _
    $region3: #{tpu_custom_call.1} parent=1 // loop_header
      %s18 = sphi 0, %s22
      %p19 = scmp.ge.s32.totalorder %s18, 4
      %s28 = sphi 0, %s30
      %s31 = sphi 0, %s28
      %s32 = sphi 0, %s31
      %s48 = sphi 0, %s32
      %s52 = sphi 0, %s52
      %s54 = sphi 0, %s52
      %s55 = sphi 0, %s54
      %s69 = sphi 0, %s55
      %s73 = sphi 0, %s73
      %s75 = sphi 0, %s73
      %s76 = sphi 0, %s75
      %s90 = sphi 0, %s76
      %s94 = sphi 0, %s94
      %s96 = sphi 0, %s94
      %s97 = sphi 0, %s96
      %s111 = sphi 0, %s97
      %s115 = sphi 0, %s115
      %s117 = sphi 0, %s115
      %s118 = sphi 0, %s117
      %s132 = sphi 0, %s118
      %s138 = sphi 0, %s140
      %s141 = sphi 0, %s138
      %s142 = sphi 0, %s141
      %s158 = sphi 0, %s142
    $region4: #{tpu_custom_call.1} parent=1 // loop_header_branch
      %21 = sbr.rel (%p19) target = $region8
    $region5: #{tpu_custom_call.1} parent=1 // loop_body
      %s23 = ssub.s32 %s18, 1
      %s24 = ssub.s32 %s18, 2
      %s25 = sadd.s32 %s18, 1
      %s26 = ssub.s32 %s18, %s25
      %p27 = scmp.eq.s32.totalorder %s26, 0
      %s29 = sadd.s32 %s28, 1
      %s30 = scalar_select %p27, %s28, %s29
      %p33 = pneg %p27
      %p34 = scmp.eq.s32.totalorder %s18, 1
      %p35 = por %p33, %p34
      %p36 = scmp.ne.s32.totalorder %s28, %s31
      %p37 = scmp.eq.s32.totalorder %s18, 0
      %p38 = por %p36, %p37
      %p39 = scmp.ne.s32.totalorder %s28, %s31
      %p40 = scmp.eq.s32.totalorder %s23, 1
      %p41 = por %p39, %p40
      %p42 = scmp.ne.s32.totalorder %s31, %s32
      %p43 = scmp.eq.s32.totalorder %s23, 0
      %p44 = por %p42, %p43
      %p45 = scmp.ne.s32.totalorder %s31, %s32
      %p46 = scmp.eq.s32.totalorder %s24, 1
      %p47 = por %p45, %p46
      %p49 = scmp.ne.s32.totalorder %s32, %s48
      %p50 = scmp.eq.s32.totalorder %s24, 0
      %p51 = por %p49, %p50
      %s53 = sadd.s32 %s52, 1
      %p56 = scmp.eq.s32.totalorder %s18, 1
      %p57 = scmp.ne.s32.totalorder %s52, %s54
      %p58 = scmp.eq.s32.totalorder %s18, 0
      %p59 = por %p57, %p58
      %p60 = scmp.ne.s32.totalorder %s52, %s54
      %p61 = scmp.eq.s32.totalorder %s23, 1
      %p62 = por %p60, %p61
      %p63 = scmp.ne.s32.totalorder %s54, %s55
      %p64 = scmp.eq.s32.totalorder %s23, 0
      %p65 = por %p63, %p64
      %p66 = scmp.ne.s32.totalorder %s54, %s55
      %p67 = scmp.eq.s32.totalorder %s24, 1
      %p68 = por %p66, %p67
      %p70 = scmp.ne.s32.totalorder %s55, %s69
      %p71 = scmp.eq.s32.totalorder %s24, 0
      %p72 = por %p70, %p71
      %s74 = sadd.s32 %s73, 1
      %p77 = scmp.eq.s32.totalorder %s18, 1
      %p78 = scmp.ne.s32.totalorder %s73, %s75
      %p79 = scmp.eq.s32.totalorder %s18, 0
      %p80 = por %p78, %p79
      %p81 = scmp.ne.s32.totalorder %s73, %s75
      %p82 = scmp.eq.s32.totalorder %s23, 1
      %p83 = por %p81, %p82
      %p84 = scmp.ne.s32.totalorder %s75, %s76
      %p85 = scmp.eq.s32.totalorder %s23, 0
      %p86 = por %p84, %p85
      %p87 = scmp.ne.s32.totalorder %s75, %s76
      %p88 = scmp.eq.s32.totalorder %s24, 1
      %p89 = por %p87, %p88
      %p91 = scmp.ne.s32.totalorder %s76, %s90
      %p92 = scmp.eq.s32.totalorder %s24, 0
      %p93 = por %p91, %p92
      %s95 = sadd.s32 %s94, 1
      %p98 = scmp.eq.s32.totalorder %s18, 1
      %p99 = scmp.ne.s32.totalorder %s94, %s96
      %p100 = scmp.eq.s32.totalorder %s18, 0
      %p101 = por %p99, %p100
      %p102 = scmp.ne.s32.totalorder %s94, %s96
      %p103 = scmp.eq.s32.totalorder %s23, 1
      %p104 = por %p102, %p103
      %p105 = scmp.ne.s32.totalorder %s96, %s97
      %p106 = scmp.eq.s32.totalorder %s23, 0
      %p107 = por %p105, %p106
      %p108 = scmp.ne.s32.totalorder %s96, %s97
      %p109 = scmp.eq.s32.totalorder %s24, 1
      %p110 = por %p108, %p109
      %p112 = scmp.ne.s32.totalorder %s97, %s111
      %p113 = scmp.eq.s32.totalorder %s24, 0
      %p114 = por %p112, %p113
      %s116 = sadd.s32 %s115, 1
      %p119 = scmp.eq.s32.totalorder %s18, 1
      %p120 = scmp.ne.s32.totalorder %s115, %s117
      %p121 = scmp.eq.s32.totalorder %s18, 0
      %p122 = por %p120, %p121
      %p123 = scmp.ne.s32.totalorder %s115, %s117
      %p124 = scmp.eq.s32.totalorder %s23, 1
      %p125 = por %p123, %p124
      %p126 = scmp.ne.s32.totalorder %s117, %s118
      %p127 = scmp.eq.s32.totalorder %s23, 0
      %p128 = por %p126, %p127
      %p129 = scmp.ne.s32.totalorder %s117, %s118
      %p130 = scmp.eq.s32.totalorder %s24, 1
      %p131 = por %p129, %p130
      %p133 = scmp.ne.s32.totalorder %s118, %s132
      %p134 = scmp.eq.s32.totalorder %s24, 0
      %p135 = por %p133, %p134
      %s136 = ssub.s32 %s18, %s25
      %p137 = scmp.eq.s32.totalorder %s136, 0
      %s139 = sadd.s32 %s138, 1
      %s140 = scalar_select %p137, %s138, %s139
      %p143 = pneg %p137
      %p144 = scmp.eq.s32.totalorder %s18, 1
      %p145 = por %p143, %p144
      %p146 = scmp.ne.s32.totalorder %s138, %s141
      %p147 = scmp.eq.s32.totalorder %s18, 0
      %p148 = por %p146, %p147
      %p149 = scmp.ne.s32.totalorder %s138, %s141
      %p150 = scmp.eq.s32.totalorder %s23, 1
      %p151 = por %p149, %p150
      %p152 = scmp.ne.s32.totalorder %s141, %s142
      %p153 = scmp.eq.s32.totalorder %s23, 0
      %p154 = por %p152, %p153
      %p155 = scmp.ne.s32.totalorder %s141, %s142
      %p156 = scmp.eq.s32.totalorder %s24, 1
      %p157 = por %p155, %p156
      %p159 = scmp.ne.s32.totalorder %s142, %s158
      %p160 = scmp.eq.s32.totalorder %s24, 0
      %p161 = por %p159, %p160
      %p162 = scmp.le.s32.totalorder 1, %s18
      %p163 = scmp.lt.s32.totalorder %s18, 3
      %p164 = pnand %p162, %p163
      %p165 = pneg %p164
      // Predicated region
      $region9: #{tpu_custom_call.1} parent=5 // pred_check
        _
      $region10: #{tpu_custom_call.1} parent=5 // pred_check_branch
        %167 = sbr.rel (%p164) target = $region12
      $region11: #{tpu_custom_call.1} parent=5 // pred_region
        %s168 = ssub.s32 %s18, 1
        // Predicated region
        $region13: #{tpu_custom_call.1} parent=11 // pred_check
          %p169 = pneg %p65
        $region14: #{tpu_custom_call.1} parent=11 // pred_check_branch
          %171 = sbr.rel (%p169) target = $region16
        $region15: #{tpu_custom_call.1} parent=11 // pred_region
          %s173 = ssub.s32 256, 256
          %174 = vsyncadd [#allocation6], %s173
          %s175 = sshll.u32 [#allocation5], 4
          %s176 = int_to_ptr.vmem [resolvable:$true] %s175
          %181 = dma.hbm_to_vmem [thread:$0]  %s1, 256, %s176, [#allocation6], 64, 64, 4
        $region16: #{tpu_custom_call.1} parent=11 // pred_fallthru
          _
        // Predicated region
        $region17: #{tpu_custom_call.1} parent=11 // pred_check
          %p182 = pneg %p86
        $region18: #{tpu_custom_call.1} parent=11 // pred_check_branch
          %184 = sbr.rel (%p182) target = $region20
        $region19: #{tpu_custom_call.1} parent=11 // pred_region
          _
        $region20: #{tpu_custom_call.1} parent=11 // pred_fallthru
          _
        // Predicated region
        $region21: #{tpu_custom_call.1} parent=11 // pred_check
          %p185 = pneg %p107
        $region22: #{tpu_custom_call.1} parent=11 // pred_check_branch
          %187 = sbr.rel (%p185) target = $region24
        $region23: #{tpu_custom_call.1} parent=11 // pred_region
          %s189 = ssub.s32 256, 256
          %190 = vsyncadd [#allocation6], %s189
          %s191 = sshll.u32 [#allocation7], 4
          %s192 = int_to_ptr.vmem [resolvable:$true] %s191
          %197 = dma.hbm_to_vmem [thread:$0]  %s3, 256, %s192, [#allocation6], 64, 64, 4
        $region24: #{tpu_custom_call.1} parent=11 // pred_fallthru
          _
        // Predicated region
        $region25: #{tpu_custom_call.1} parent=11 // pred_check
          %p198 = pneg %p128
        $region26: #{tpu_custom_call.1} parent=11 // pred_check_branch
          %200 = sbr.rel (%p198) target = $region28
        $region27: #{tpu_custom_call.1} parent=11 // pred_region
          _
        $region28: #{tpu_custom_call.1} parent=11 // pred_fallthru
          _
      $region12: #{tpu_custom_call.1} parent=5 // pred_fallthru
        _
      %p201 = scmp.lt.s32.totalorder %s18, 2
      // Predicated region
      $region29: #{tpu_custom_call.1} parent=5 // pred_check
        %p202 = pneg %p201
      $region30: #{tpu_custom_call.1} parent=5 // pred_check_branch
        %204 = sbr.rel (%p202) target = $region32
      $region31: #{tpu_custom_call.1} parent=5 // pred_region
        // Predicated region
        $region33: #{tpu_custom_call.1} parent=31 // pred_check
          %p205 = pneg %p38
        $region34: #{tpu_custom_call.1} parent=31 // pred_check_branch
          %207 = sbr.rel (%p205) target = $region36
        $region35: #{tpu_custom_call.1} parent=31 // pred_region
          %s208 = sand.u32 %s28, 1
          %s209 = scalar_lea.sflag [#allocation3], %s208
          %s210 = sand.u32 %s28, 1
          %s211 = smul.addr %s210, 8
          %s212 = scalar_lea.vmem [#allocation2], %s211
          %s214 = ssub.s32 128, 128
          %215 = vsyncadd %s209, %s214
          %s216 = smul.addr %s18, 128
          %s217 = scalar_lea.hbm %s0, %s216
          %s219 = sshll.u32 %s212, 4
          %s220 = int_to_ptr.vmem [resolvable:$true] %s219
          %222 = dma.hbm_to_vmem [thread:$0]  %s217, 128, %s220, %s209
        $region36: #{tpu_custom_call.1} parent=31 // pred_fallthru
          _
      $region32: #{tpu_custom_call.1} parent=5 // pred_fallthru
        _
      %p223 = scmp.le.s32.totalorder 1, %s18
      %p224 = scmp.lt.s32.totalorder %s18, 3
      %p225 = pnand %p223, %p224
      %p226 = pneg %p225
      // Predicated region
      $region37: #{tpu_custom_call.1} parent=5 // pred_check
        _
      $region38: #{tpu_custom_call.1} parent=5 // pred_check_branch
        %228 = sbr.rel (%p225) target = $region40
      $region39: #{tpu_custom_call.1} parent=5 // pred_region
        %s229 = ssub.s32 %s18, 1
        %s230 = sand.u32 %s31, 1
        %s231 = scalar_lea.sflag [#allocation3], %s230
        %s232 = sand.u32 %s31, 1
        %s233 = smul.addr %s232, 8
        %s234 = scalar_lea.vmem [#allocation2], %s233
        // Predicated region
        $region41: #{tpu_custom_call.1} parent=39 // pred_check
          %p235 = pneg %p44
        $region42: #{tpu_custom_call.1} parent=39 // pred_check_branch
          %237 = sbr.rel (%p235) target = $region44
        $region43: #{tpu_custom_call.1} parent=39 // pred_region
          %238 = dma.done %s231, 128
        $region44: #{tpu_custom_call.1} parent=39 // pred_fallthru
          _
        // Predicated region
        $region45: #{tpu_custom_call.1} parent=39 // pred_check
          %p239 = pneg %p65
        $region46: #{tpu_custom_call.1} parent=39 // pred_check_branch
          %241 = sbr.rel (%p239) target = $region48
        $region47: #{tpu_custom_call.1} parent=39 // pred_region
          %242 = dma.done [#allocation6], 256
        $region48: #{tpu_custom_call.1} parent=39 // pred_fallthru
          _
        // Predicated region
        $region49: #{tpu_custom_call.1} parent=39 // pred_check
          %p243 = pneg %p107
        $region50: #{tpu_custom_call.1} parent=39 // pred_check_branch
          %245 = sbr.rel (%p243) target = $region52
        $region51: #{tpu_custom_call.1} parent=39 // pred_region
          %246 = dma.done [#allocation6], 256
        $region52: #{tpu_custom_call.1} parent=39 // pred_fallthru
          _
        %s247 = sand.u32 %s31, 1
        %s248 = scalar_lea.sflag [#allocation3], %s247
        %s249 = sand.u32 %s31, 1
        %s250 = smul.addr %s249, 8
        %s251 = scalar_lea.vmem [#allocation2], %s250
        %p252 = pneg %p44
        %p253 = pneg %p41
        %p254 = pneg %p65
        %p255 = pneg %p62
        %p256 = pneg %p86
        %p257 = pneg %p83
        %p258 = pneg %p107
        %p259 = pneg %p104
        %p260 = pneg %p128
        %p261 = pneg %p125
        %p262 = pneg %p154
        %p263 = pneg %p151
        %s264 = sand.u32 %s141, 1
        %s265 = scalar_lea.sflag [#allocation4], %s264
        %s266 = sand.u32 %s141, 1
        %s267 = smul.addr %s266, 8
        %s268 = scalar_lea.vmem [#allocation8], %s267
        %v270 = vld [vmem:[%s234] sm:$0xff]
        %v271 = vpack.c.bf16 %v270, %v270
        %v272 = vld [vmem:[#allocation5] sm:$0xf]
        %v273 = vld [vmem:[#allocation5 + $0x4] sm:$0xf]
        %v274 = vld [vmem:[#allocation5 + $0x8] sm:$0xf]
        %v275 = vld [vmem:[#allocation5 + $0xc] sm:$0xf]
        %v276 = vld [vmem:[%s2] sm:$0x1]
        %v278 = vlaneseq
        %v279 = vshrl.u32 %v278, 7
        %v280 = vsub.s32 0, %v279
        %v281 = vrot.slane %v276, %v280
        %v287 = vunpack.c.l.b16 %v272
        %v288 = vunpack.c.l.b16 %v273
        %v289 = vunpack.c.l.b16 %v274
        %v290 = vunpack.c.l.b16 %v275
        %v291 = vpack.c.b16 %v288, %v287
        %v292 = vpack.c.b16 %v290, %v289
        %vm295 = vcmask 261120
        %v297 = vsel %vm295, %v271, 0
        %299 = vmatprep.subr.bf16.mxu0 0
        %300 = vmatpush1.bf16.msra.mxu0 0
        %301 = vmatprep.subr.bf16.mxu0 0
        %302 = vmatpush1.bf16.msra.mxu0 0
        %303 = vmatprep.subr.bf16.mxu0 0
        %304 = vmatpush1.bf16.msra.mxu0 0
        %305 = vmatprep.subr.bf16.mxu0 0
        %306 = vmatpush1.bf16.msra.mxu0 0
        %307 = vmatprep.subr.bf16.mxu0 0
        %308 = vmatpush1.bf16.msra.mxu0 0
        %309 = vmatprep.subr.bf16.mxu0 0
        %310 = vmatpush1.bf16.msra.mxu0 0
        %311 = vmatprep.subr.bf16.mxu0 0
        %312 = vmatpush1.bf16.msra.mxu0 %v292
        %313 = vmatprep.subr.bf16.mxu0 0
        %314 = vmatpush1.bf16.msra.mxu0 %v291
        %315 = vmatprep.subr.bf16.mxu0 0
        %316 = vmatpush2.bf16.msra.mxu0 0
        %317 = vmatprep.subr.bf16.mxu0 0
        %318 = vmatpush2.bf16.msra.mxu0 0
        %319 = vmatprep.subr.bf16.mxu0 0
        %320 = vmatpush2.bf16.msra.mxu0 0
        %321 = vmatprep.subr.bf16.mxu0 0
        %322 = vmatpush2.bf16.msra.mxu0 0
        %323 = vmatprep.subr.bf16.mxu0 0
        %324 = vmatpush2.bf16.msra.mxu0 0
        %325 = vmatprep.subr.bf16.mxu0 0
        %326 = vmatpush2.bf16.msra.mxu0 0
        %327 = vmatprep.subr.bf16.mxu0 0
        %328 = vmatpush2.bf16.msra.mxu0 0
        %329 = vmatprep.subr.bf16.mxu0 0
        %330 = vmatpush2.bf16.msra.mxu0 0
        %331 = vmatprep.mubr.bf16.mxu0 0
        %332 = vmatmul.mubr.bf16.gmra.mxu0 %v297
        %v333 = vpop.f32.mrf.mxu0
        %v334 = vadd.f32 %v281, %v333
        %v335 = vpop.f32.mrf.mxu0
        %v336 = vpop.f32.mrf.mxu0
        %v337 = vpop.f32.mrf.mxu0
        %338 = vdwg.mxu0
        %v339 = vpack.c.bf16 %v334, %v334
        %341 = vrot.lane.b32.xlu0 %v339, 96
        %v342 = vpop.permute.xlu0 %341
        %vm343 = vcmask 64512
        %v345 = vsel %vm343, %v339, 0
        %v348 = vsel %vm343, %v342, 0
        %350 = vmatprep.subr.bf16.mxu0 0
        %351 = vmatpush1.bf16.xpose.msra.mxu0 0
        %352 = vmatprep.subr.bf16.mxu0 0
        %353 = vmatpush1.bf16.xpose.msra.mxu0 0
        %354 = vmatprep.subr.bf16.mxu0 0
        %355 = vmatpush1.bf16.xpose.msra.mxu0 0
        %356 = vmatprep.subr.bf16.mxu0 0
        %357 = vmatpush1.bf16.xpose.msra.mxu0 0
        %358 = vmatprep.subr.bf16.mxu0 0
        %359 = vmatpush1.bf16.xpose.msra.mxu0 0
        %360 = vmatprep.subr.bf16.mxu0 0
        %361 = vmatpush1.bf16.xpose.msra.mxu0 0
        %362 = vmatprep.subr.bf16.mxu0 0
        %363 = vmatpush1.bf16.xpose.msra.mxu0 0
        %364 = vmatprep.subr.bf16.mxu0 0
        %365 = vmatpush1.bf16.xpose.msra.mxu0 %v348
        %366 = vmatprep.subr.bf16.mxu0 0
        %367 = vmatpush2.bf16.xpose.msra.mxu0 0
        %368 = vmatprep.subr.bf16.mxu0 0
        %369 = vmatpush2.bf16.xpose.msra.mxu0 0
        %370 = vmatprep.subr.bf16.mxu0 0
        %371 = vmatpush2.bf16.xpose.msra.mxu0 0
        %372 = vmatprep.subr.bf16.mxu0 0
        %373 = vmatpush2.bf16.xpose.msra.mxu0 0
        %374 = vmatprep.subr.bf16.mxu0 0
        %375 = vmatpush2.bf16.xpose.msra.mxu0 0
        %376 = vmatprep.subr.bf16.mxu0 0
        %377 = vmatpush2.bf16.xpose.msra.mxu0 0
        %378 = vmatprep.subr.bf16.mxu0 0
        %379 = vmatpush2.bf16.xpose.msra.mxu0 0
        %380 = vmatprep.subr.bf16.mxu0 0
        %381 = vmatpush2.bf16.xpose.msra.mxu0 0
        %382 = vmatprep.mubr.bf16.mxu0 0
        %383 = vmatmul.mubr.bf16.gmra.mxu0 %v345
        %v384 = vpop.f32.mrf.mxu0
        %v385 = vadd.f32 0.0, %v384
        %v386 = vpop.f32.mrf.mxu0
        %v387 = vpop.f32.mrf.mxu0
        %v388 = vpop.f32.mrf.mxu0
        %389 = vdwg.mxu0
        %v390 = vsel %vm343, %v385, -inf
        %391 = vmax.xlane.f32.xlu0 %v390
        %v392 = vpop.xlane.xlu0 %391
        %v393 = vsub.f32 %v385, %v392
        %v394 = vmul.f32 %v393, 1.442695
        %v395 = vpow.pop %v394
        %v396 = vsel %vm343, %v395, 0.0
        %397 = vadd.xlane.f32.xlu0 %v396
        %v398 = vpop.xlane.xlu0 %397
        %v399 = vpack.c.bf16 %v395, %v395
        %400 = vrot.lane.b32.xlu0 %v339, 64
        %v401 = vpop.permute.xlu0 %400
        %v403 = vsel %vm343, %v399, 0
        %vm405 = vcmask 1043456
        %v407 = vsel %vm405, %v401, 0
        %409 = vmatprep.subr.bf16.mxu0 0
        %410 = vmatpush1.bf16.msra.mxu0 0
        %411 = vmatprep.subr.bf16.mxu0 0
        %412 = vmatpush1.bf16.msra.mxu0 0
        %413 = vmatprep.subr.bf16.mxu0 0
        %414 = vmatpush1.bf16.msra.mxu0 0
        %415 = vmatprep.subr.bf16.mxu0 0
        %416 = vmatpush1.bf16.msra.mxu0 0
        %417 = vmatprep.subr.bf16.mxu0 0
        %418 = vmatpush1.bf16.msra.mxu0 0
        %419 = vmatprep.subr.bf16.mxu0 0
        %420 = vmatpush1.bf16.msra.mxu0 0
        %421 = vmatprep.subr.bf16.mxu0 0
        %422 = vmatpush1.bf16.msra.mxu0 0
        %423 = vmatprep.subr.bf16.mxu0 0
        %424 = vmatpush1.bf16.msra.mxu0 %v407
        %425 = vmatprep.subr.bf16.mxu0 0
        %426 = vmatpush2.bf16.msra.mxu0 0
        %427 = vmatprep.subr.bf16.mxu0 0
        %428 = vmatpush2.bf16.msra.mxu0 0
        %429 = vmatprep.subr.bf16.mxu0 0
        %430 = vmatpush2.bf16.msra.mxu0 0
        %431 = vmatprep.subr.bf16.mxu0 0
        %432 = vmatpush2.bf16.msra.mxu0 0
        %433 = vmatprep.subr.bf16.mxu0 0
        %434 = vmatpush2.bf16.msra.mxu0 0
        %435 = vmatprep.subr.bf16.mxu0 0
        %436 = vmatpush2.bf16.msra.mxu0 0
        %437 = vmatprep.subr.bf16.mxu0 0
        %438 = vmatpush2.bf16.msra.mxu0 0
        %439 = vmatprep.subr.bf16.mxu0 0
        %440 = vmatpush2.bf16.msra.mxu0 0
        %441 = vmatprep.mubr.bf16.mxu0 0
        %442 = vmatmul.mubr.bf16.gmra.mxu0 %v403
        %v443 = vpop.f32.mrf.mxu0
        %v444 = vadd.f32 0.0, %v443
        %v445 = vpop.f32.mrf.mxu0
        %v446 = vpop.f32.mrf.mxu0
        %v447 = vpop.f32.mrf.mxu0
        %448 = vdwg.mxu0
        %v449 = vrcp.pop %v398
        %v450 = vmul.f32 %v444, %v449
        %451 = vrot.lane.b32.xlu0 %v339, 120
        %v452 = vpop.permute.xlu0 %451
        %453 = vrot.lane.b32.xlu0 %v339, 88
        %v454 = vpop.permute.xlu0 %453
        %v456 = vsel %vm343, %v452, 0
        %v459 = vsel %vm343, %v454, 0
        %461 = vmatprep.subr.bf16.mxu0 0
        %462 = vmatpush1.bf16.xpose.msra.mxu0 0
        %463 = vmatprep.subr.bf16.mxu0 0
        %464 = vmatpush1.bf16.xpose.msra.mxu0 0
        %465 = vmatprep.subr.bf16.mxu0 0
        %466 = vmatpush1.bf16.xpose.msra.mxu0 0
        %467 = vmatprep.subr.bf16.mxu0 0
        %468 = vmatpush1.bf16.xpose.msra.mxu0 0
        %469 = vmatprep.subr.bf16.mxu0 0
        %470 = vmatpush1.bf16.xpose.msra.mxu0 0
        %471 = vmatprep.subr.bf16.mxu0 0
        %472 = vmatpush1.bf16.xpose.msra.mxu0 0
        %473 = vmatprep.subr.bf16.mxu0 0
        %474 = vmatpush1.bf16.xpose.msra.mxu0 0
        %475 = vmatprep.subr.bf16.mxu0 0
        %476 = vmatpush1.bf16.xpose.msra.mxu0 %v459
        %477 = vmatprep.subr.bf16.mxu0 0
        %478 = vmatpush2.bf16.xpose.msra.mxu0 0
        %479 = vmatprep.subr.bf16.mxu0 0
        %480 = vmatpush2.bf16.xpose.msra.mxu0 0
        %481 = vmatprep.subr.bf16.mxu0 0
        %482 = vmatpush2.bf16.xpose.msra.mxu0 0
        %483 = vmatprep.subr.bf16.mxu0 0
        %484 = vmatpush2.bf16.xpose.msra.mxu0 0
        %485 = vmatprep.subr.bf16.mxu0 0
        %486 = vmatpush2.bf16.xpose.msra.mxu0 0
        %487 = vmatprep.subr.bf16.mxu0 0
        %488 = vmatpush2.bf16.xpose.msra.mxu0 0
        %489 = vmatprep.subr.bf16.mxu0 0
        %490 = vmatpush2.bf16.xpose.msra.mxu0 0
        %491 = vmatprep.subr.bf16.mxu0 0
        %492 = vmatpush2.bf16.xpose.msra.mxu0 0
        %493 = vmatprep.mubr.bf16.mxu0 0
        %494 = vmatmul.mubr.bf16.gmra.mxu0 %v456
        %v495 = vpop.f32.mrf.mxu0
        %v496 = vadd.f32 0.0, %v495
        %v497 = vpop.f32.mrf.mxu0
        %v498 = vpop.f32.mrf.mxu0
        %v499 = vpop.f32.mrf.mxu0
        %500 = vdwg.mxu0
        %v501 = vsel %vm343, %v496, -inf
        %502 = vmax.xlane.f32.xlu0 %v501
        %v503 = vpop.xlane.xlu0 %502
        %v504 = vsub.f32 %v496, %v503
        %v505 = vmul.f32 %v504, 1.442695
        %v506 = vpow.pop %v505
        %v507 = vsel %vm343, %v506, 0.0
        %508 = vadd.xlane.f32.xlu0 %v507
        %v509 = vpop.xlane.xlu0 %508
        %v510 = vpack.c.bf16 %v506, %v506
        %511 = vrot.lane.b32.xlu0 %v339, 56
        %v512 = vpop.permute.xlu0 %511
        %v514 = vsel %vm343, %v510, 0
        %v517 = vsel %vm405, %v512, 0
        %519 = vmatprep.subr.bf16.mxu0 0
        %520 = vmatpush1.bf16.msra.mxu0 0
        %521 = vmatprep.subr.bf16.mxu0 0
        %522 = vmatpush1.bf16.msra.mxu0 0
        %523 = vmatprep.subr.bf16.mxu0 0
        %524 = vmatpush1.bf16.msra.mxu0 0
        %525 = vmatprep.subr.bf16.mxu0 0
        %526 = vmatpush1.bf16.msra.mxu0 0
        %527 = vmatprep.subr.bf16.mxu0 0
        %528 = vmatpush1.bf16.msra.mxu0 0
        %529 = vmatprep.subr.bf16.mxu0 0
        %530 = vmatpush1.bf16.msra.mxu0 0
        %531 = vmatprep.subr.bf16.mxu0 0
        %532 = vmatpush1.bf16.msra.mxu0 0
        %533 = vmatprep.subr.bf16.mxu0 0
        %534 = vmatpush1.bf16.msra.mxu0 %v517
        %535 = vmatprep.subr.bf16.mxu0 0
        %536 = vmatpush2.bf16.msra.mxu0 0
        %537 = vmatprep.subr.bf16.mxu0 0
        %538 = vmatpush2.bf16.msra.mxu0 0
        %539 = vmatprep.subr.bf16.mxu0 0
        %540 = vmatpush2.bf16.msra.mxu0 0
        %541 = vmatprep.subr.bf16.mxu0 0
        %542 = vmatpush2.bf16.msra.mxu0 0
        %543 = vmatprep.subr.bf16.mxu0 0
        %544 = vmatpush2.bf16.msra.mxu0 0
        %545 = vmatprep.subr.bf16.mxu0 0
        %546 = vmatpush2.bf16.msra.mxu0 0
        %547 = vmatprep.subr.bf16.mxu0 0
        %548 = vmatpush2.bf16.msra.mxu0 0
        %549 = vmatprep.subr.bf16.mxu0 0
        %550 = vmatpush2.bf16.msra.mxu0 0
        %551 = vmatprep.mubr.bf16.mxu0 0
        %552 = vmatmul.mubr.bf16.gmra.mxu0 %v514
        %v553 = vpop.f32.mrf.mxu0
        %v554 = vadd.f32 0.0, %v553
        %v555 = vpop.f32.mrf.mxu0
        %v556 = vpop.f32.mrf.mxu0
        %v557 = vpop.f32.mrf.mxu0
        %558 = vdwg.mxu0
        %v559 = vrcp.pop %v509
        %v560 = vmul.f32 %v554, %v559
        %561 = vrot.lane.b32.xlu0 %v339, 112
        %v562 = vpop.permute.xlu0 %561
        %563 = vrot.lane.b32.xlu0 %v339, 80
        %v564 = vpop.permute.xlu0 %563
        %v566 = vsel %vm343, %v562, 0
        %v569 = vsel %vm343, %v564, 0
        %571 = vmatprep.subr.bf16.mxu0 0
        %572 = vmatpush1.bf16.xpose.msra.mxu0 0
        %573 = vmatprep.subr.bf16.mxu0 0
        %574 = vmatpush1.bf16.xpose.msra.mxu0 0
        %575 = vmatprep.subr.bf16.mxu0 0
        %576 = vmatpush1.bf16.xpose.msra.mxu0 0
        %577 = vmatprep.subr.bf16.mxu0 0
        %578 = vmatpush1.bf16.xpose.msra.mxu0 0
        %579 = vmatprep.subr.bf16.mxu0 0
        %580 = vmatpush1.bf16.xpose.msra.mxu0 0
        %581 = vmatprep.subr.bf16.mxu0 0
        %582 = vmatpush1.bf16.xpose.msra.mxu0 0
        %583 = vmatprep.subr.bf16.mxu0 0
        %584 = vmatpush1.bf16.xpose.msra.mxu0 0
        %585 = vmatprep.subr.bf16.mxu0 0
        %586 = vmatpush1.bf16.xpose.msra.mxu0 %v569
        %587 = vmatprep.subr.bf16.mxu0 0
        %588 = vmatpush2.bf16.xpose.msra.mxu0 0
        %589 = vmatprep.subr.bf16.mxu0 0
        %590 = vmatpush2.bf16.xpose.msra.mxu0 0
        %591 = vmatprep.subr.bf16.mxu0 0
        %592 = vmatpush2.bf16.xpose.msra.mxu0 0
        %593 = vmatprep.subr.bf16.mxu0 0
        %594 = vmatpush2.bf16.xpose.msra.mxu0 0
        %595 = vmatprep.subr.bf16.mxu0 0
        %596 = vmatpush2.bf16.xpose.msra.mxu0 0
        %597 = vmatprep.subr.bf16.mxu0 0
        %598 = vmatpush2.bf16.xpose.msra.mxu0 0
        %599 = vmatprep.subr.bf16.mxu0 0
        %600 = vmatpush2.bf16.xpose.msra.mxu0 0
        %601 = vmatprep.subr.bf16.mxu0 0
        %602 = vmatpush2.bf16.xpose.msra.mxu0 0
        %603 = vmatprep.mubr.bf16.mxu0 0
        %604 = vmatmul.mubr.bf16.gmra.mxu0 %v566
        %v605 = vpop.f32.mrf.mxu0
        %v606 = vadd.f32 0.0, %v605
        %v607 = vpop.f32.mrf.mxu0
        %v608 = vpop.f32.mrf.mxu0
        %v609 = vpop.f32.mrf.mxu0
        %610 = vdwg.mxu0
        %v611 = vsel %vm343, %v606, -inf
        %612 = vmax.xlane.f32.xlu0 %v611
        %v613 = vpop.xlane.xlu0 %612
        %v614 = vsub.f32 %v606, %v613
        %v615 = vmul.f32 %v614, 1.442695
        %v616 = vpow.pop %v615
        %v617 = vsel %vm343, %v616, 0.0
        %618 = vadd.xlane.f32.xlu0 %v617
        %v619 = vpop.xlane.xlu0 %618
        %v620 = vpack.c.bf16 %v616, %v616
        %621 = vrot.lane.b32.xlu0 %v339, 48
        %v622 = vpop.permute.xlu0 %621
        %v624 = vsel %vm343, %v620, 0
        %v627 = vsel %vm405, %v622, 0
        %629 = vmatprep.subr.bf16.mxu0 0
        %630 = vmatpush1.bf16.msra.mxu0 0
        %631 = vmatprep.subr.bf16.mxu0 0
        %632 = vmatpush1.bf16.msra.mxu0 0
        %633 = vmatprep.subr.bf16.mxu0 0
        %634 = vmatpush1.bf16.msra.mxu0 0
        %635 = vmatprep.subr.bf16.mxu0 0
        %636 = vmatpush1.bf16.msra.mxu0 0
        %637 = vmatprep.subr.bf16.mxu0 0
        %638 = vmatpush1.bf16.msra.mxu0 0
        %639 = vmatprep.subr.bf16.mxu0 0
        %640 = vmatpush1.bf16.msra.mxu0 0
        %641 = vmatprep.subr.bf16.mxu0 0
        %642 = vmatpush1.bf16.msra.mxu0 0
        %643 = vmatprep.subr.bf16.mxu0 0
        %644 = vmatpush1.bf16.msra.mxu0 %v627
        %645 = vmatprep.subr.bf16.mxu0 0
        %646 = vmatpush2.bf16.msra.mxu0 0
        %647 = vmatprep.subr.bf16.mxu0 0
        %648 = vmatpush2.bf16.msra.mxu0 0
        %649 = vmatprep.subr.bf16.mxu0 0
        %650 = vmatpush2.bf16.msra.mxu0 0
        %651 = vmatprep.subr.bf16.mxu0 0
        %652 = vmatpush2.bf16.msra.mxu0 0
        %653 = vmatprep.subr.bf16.mxu0 0
        %654 = vmatpush2.bf16.msra.mxu0 0
        %655 = vmatprep.subr.bf16.mxu0 0
        %656 = vmatpush2.bf16.msra.mxu0 0
        %657 = vmatprep.subr.bf16.mxu0 0
        %658 = vmatpush2.bf16.msra.mxu0 0
        %659 = vmatprep.subr.bf16.mxu0 0
        %660 = vmatpush2.bf16.msra.mxu0 0
        %661 = vmatprep.mubr.bf16.mxu0 0
        %662 = vmatmul.mubr.bf16.gmra.mxu0 %v624
        %v663 = vpop.f32.mrf.mxu0
        %v664 = vadd.f32 0.0, %v663
        %v665 = vpop.f32.mrf.mxu0
        %v666 = vpop.f32.mrf.mxu0
        %v667 = vpop.f32.mrf.mxu0
        %668 = vdwg.mxu0
        %v669 = vrcp.pop %v619
        %v670 = vmul.f32 %v664, %v669
        %671 = vrot.lane.b32.xlu0 %v339, 104
        %v672 = vpop.permute.xlu0 %671
        %673 = vrot.lane.b32.xlu0 %v339, 72
        %v674 = vpop.permute.xlu0 %673
        %v676 = vsel %vm343, %v672, 0
        %v679 = vsel %vm343, %v674, 0
        %681 = vmatprep.subr.bf16.mxu0 0
        %682 = vmatpush1.bf16.xpose.msra.mxu0 0
        %683 = vmatprep.subr.bf16.mxu0 0
        %684 = vmatpush1.bf16.xpose.msra.mxu0 0
        %685 = vmatprep.subr.bf16.mxu0 0
        %686 = vmatpush1.bf16.xpose.msra.mxu0 0
        %687 = vmatprep.subr.bf16.mxu0 0
        %688 = vmatpush1.bf16.xpose.msra.mxu0 0
        %689 = vmatprep.subr.bf16.mxu0 0
        %690 = vmatpush1.bf16.xpose.msra.mxu0 0
        %691 = vmatprep.subr.bf16.mxu0 0
        %692 = vmatpush1.bf16.xpose.msra.mxu0 0
        %693 = vmatprep.subr.bf16.mxu0 0
        %694 = vmatpush1.bf16.xpose.msra.mxu0 0
        %695 = vmatprep.subr.bf16.mxu0 0
        %696 = vmatpush1.bf16.xpose.msra.mxu0 %v679
        %697 = vmatprep.subr.bf16.mxu0 0
        %698 = vmatpush2.bf16.xpose.msra.mxu0 0
        %699 = vmatprep.subr.bf16.mxu0 0
        %700 = vmatpush2.bf16.xpose.msra.mxu0 0
        %701 = vmatprep.subr.bf16.mxu0 0
        %702 = vmatpush2.bf16.xpose.msra.mxu0 0
        %703 = vmatprep.subr.bf16.mxu0 0
        %704 = vmatpush2.bf16.xpose.msra.mxu0 0
        %705 = vmatprep.subr.bf16.mxu0 0
        %706 = vmatpush2.bf16.xpose.msra.mxu0 0
        %707 = vmatprep.subr.bf16.mxu0 0
        %708 = vmatpush2.bf16.xpose.msra.mxu0 0
        %709 = vmatprep.subr.bf16.mxu0 0
        %710 = vmatpush2.bf16.xpose.msra.mxu0 0
        %711 = vmatprep.subr.bf16.mxu0 0
        %712 = vmatpush2.bf16.xpose.msra.mxu0 0
        %713 = vmatprep.mubr.bf16.mxu0 0
        %714 = vmatmul.mubr.bf16.gmra.mxu0 %v676
        %v715 = vpop.f32.mrf.mxu0
        %v716 = vadd.f32 0.0, %v715
        %v717 = vpop.f32.mrf.mxu0
        %v718 = vpop.f32.mrf.mxu0
        %v719 = vpop.f32.mrf.mxu0
        %720 = vdwg.mxu0
        %v721 = vsel %vm343, %v716, -inf
        %722 = vmax.xlane.f32.xlu0 %v721
        %v723 = vpop.xlane.xlu0 %722
        %v724 = vsub.f32 %v716, %v723
        %v725 = vmul.f32 %v724, 1.442695
        %v726 = vpow.pop %v725
        %v727 = vsel %vm343, %v726, 0.0
        %728 = vadd.xlane.f32.xlu0 %v727
        %v729 = vpop.xlane.xlu0 %728
        %v730 = vpack.c.bf16 %v726, %v726
        %731 = vrot.lane.b32.xlu0 %v339, 40
        %v732 = vpop.permute.xlu0 %731
        %v734 = vsel %vm343, %v730, 0
        %v737 = vsel %vm405, %v732, 0
        %739 = vmatprep.subr.bf16.mxu0 0
        %740 = vmatpush1.bf16.msra.mxu0 0
        %741 = vmatprep.subr.bf16.mxu0 0
        %742 = vmatpush1.bf16.msra.mxu0 0
        %743 = vmatprep.subr.bf16.mxu0 0
        %744 = vmatpush1.bf16.msra.mxu0 0
        %745 = vmatprep.subr.bf16.mxu0 0
        %746 = vmatpush1.bf16.msra.mxu0 0
        %747 = vmatprep.subr.bf16.mxu0 0
        %748 = vmatpush1.bf16.msra.mxu0 0
        %749 = vmatprep.subr.bf16.mxu0 0
        %750 = vmatpush1.bf16.msra.mxu0 0
        %751 = vmatprep.subr.bf16.mxu0 0
        %752 = vmatpush1.bf16.msra.mxu0 0
        %753 = vmatprep.subr.bf16.mxu0 0
        %754 = vmatpush1.bf16.msra.mxu0 %v737
        %755 = vmatprep.subr.bf16.mxu0 0
        %756 = vmatpush2.bf16.msra.mxu0 0
        %757 = vmatprep.subr.bf16.mxu0 0
        %758 = vmatpush2.bf16.msra.mxu0 0
        %759 = vmatprep.subr.bf16.mxu0 0
        %760 = vmatpush2.bf16.msra.mxu0 0
        %761 = vmatprep.subr.bf16.mxu0 0
        %762 = vmatpush2.bf16.msra.mxu0 0
        %763 = vmatprep.subr.bf16.mxu0 0
        %764 = vmatpush2.bf16.msra.mxu0 0
        %765 = vmatprep.subr.bf16.mxu0 0
        %766 = vmatpush2.bf16.msra.mxu0 0
        %767 = vmatprep.subr.bf16.mxu0 0
        %768 = vmatpush2.bf16.msra.mxu0 0
        %769 = vmatprep.subr.bf16.mxu0 0
        %770 = vmatpush2.bf16.msra.mxu0 0
        %771 = vmatprep.mubr.bf16.mxu0 0
        %772 = vmatmul.mubr.bf16.gmra.mxu0 %v734
        %v773 = vpop.f32.mrf.mxu0
        %v774 = vadd.f32 0.0, %v773
        %v775 = vpop.f32.mrf.mxu0
        %v776 = vpop.f32.mrf.mxu0
        %v777 = vpop.f32.mrf.mxu0
        %778 = vdwg.mxu0
        %v779 = vrcp.pop %v729
        %v780 = vmul.f32 %v774, %v779
        %782 = vrot.lane.b32.xlu0 %v560, 8
        %v783 = vpop.permute.xlu0 %782
        %786 = vrot.lane.b32.xlu0 %v670, 16
        %v787 = vpop.permute.xlu0 %786
        %790 = vrot.lane.b32.xlu0 %v780, 24
        %v791 = vpop.permute.xlu0 %790
        %v793 = vsel %vm343, %v450, %v783
        %vm794 = vcmask 130048
        %v795 = vsel %vm794, %v793, %v787
        %vm796 = vcmask 195584
        %v797 = vsel %vm796, %v795, %v791
        %v798 = vpack.c.bf16 %v797, %v797
        %v799 = vld [vmem:[#allocation7] sm:$0xf]
        %v800 = vld [vmem:[#allocation7 + $0x4] sm:$0xf]
        %v801 = vld [vmem:[#allocation7 + $0x8] sm:$0xf]
        %v802 = vld [vmem:[#allocation7 + $0xc] sm:$0xf]
        %v803 = vld [vmem:[%s4] sm:$0x1]
        %v805 = vlaneseq
        %v806 = vshrl.u32 %v805, 7
        %v807 = vsub.s32 0, %v806
        %v808 = vrot.slane %v803, %v807
        %v814 = vunpack.c.l.b16 %v799
        %v815 = vunpack.c.l.b16 %v800
        %v816 = vunpack.c.l.b16 %v801
        %v817 = vunpack.c.l.b16 %v802
        %v818 = vpack.c.b16 %v815, %v814
        %v819 = vpack.c.b16 %v817, %v816
        %v823 = vsel %vm295, %v798, 0
        %825 = vmatprep.subr.bf16.mxu0 0
        %826 = vmatpush1.bf16.msra.mxu0 0
        %827 = vmatprep.subr.bf16.mxu0 0
        %828 = vmatpush1.bf16.msra.mxu0 0
        %829 = vmatprep.subr.bf16.mxu0 0
        %830 = vmatpush1.bf16.msra.mxu0 0
        %831 = vmatprep.subr.bf16.mxu0 0
        %832 = vmatpush1.bf16.msra.mxu0 0
        %833 = vmatprep.subr.bf16.mxu0 0
        %834 = vmatpush1.bf16.msra.mxu0 0
        %835 = vmatprep.subr.bf16.mxu0 0
        %836 = vmatpush1.bf16.msra.mxu0 0
        %837 = vmatprep.subr.bf16.mxu0 0
        %838 = vmatpush1.bf16.msra.mxu0 %v819
        %839 = vmatprep.subr.bf16.mxu0 0
        %840 = vmatpush1.bf16.msra.mxu0 %v818
        %841 = vmatprep.subr.bf16.mxu0 0
        %842 = vmatpush2.bf16.msra.mxu0 0
        %843 = vmatprep.subr.bf16.mxu0 0
        %844 = vmatpush2.bf16.msra.mxu0 0
        %845 = vmatprep.subr.bf16.mxu0 0
        %846 = vmatpush2.bf16.msra.mxu0 0
        %847 = vmatprep.subr.bf16.mxu0 0
        %848 = vmatpush2.bf16.msra.mxu0 0
        %849 = vmatprep.subr.bf16.mxu0 0
        %850 = vmatpush2.bf16.msra.mxu0 0
        %851 = vmatprep.subr.bf16.mxu0 0
        %852 = vmatpush2.bf16.msra.mxu0 0
        %853 = vmatprep.subr.bf16.mxu0 0
        %854 = vmatpush2.bf16.msra.mxu0 0
        %855 = vmatprep.subr.bf16.mxu0 0
        %856 = vmatpush2.bf16.msra.mxu0 0
        %857 = vmatprep.mubr.bf16.mxu0 0
        %858 = vmatmul.mubr.bf16.gmra.mxu0 %v823
        %v859 = vpop.f32.mrf.mxu0
        %v860 = vadd.f32 %v808, %v859
        %v861 = vpop.f32.mrf.mxu0
        %v862 = vpop.f32.mrf.mxu0
        %v863 = vpop.f32.mrf.mxu0
        %864 = vdwg.mxu0
        %865 = vst.msk [vmem:[%s268] sm:$0xff] %vm295, %v860
        %s866 = sand.u32 %s141, 1
        %s867 = scalar_lea.sflag [#allocation4], %s866
        %s868 = sand.u32 %s141, 1
        %s869 = smul.addr %s868, 8
        %s870 = scalar_lea.vmem [#allocation8], %s869
        // Predicated region
        $region53: #{tpu_custom_call.1} parent=39 // pred_check
          %p871 = pneg %p151
        $region54: #{tpu_custom_call.1} parent=39 // pred_check_branch
          %873 = sbr.rel (%p871) target = $region56
        $region55: #{tpu_custom_call.1} parent=39 // pred_region
          %s875 = ssub.s32 128, 128
          %876 = vsyncadd %s867, %s875
          %s877 = smul.addr %s23, 128
          %s878 = scalar_lea.hbm %s5, %s877
          %s880 = sshll.u32 %s870, 4
          %s881 = int_to_ptr.vmem [resolvable:$true] %s880
          %883 = dma.vmem_to_hbm [thread:$0]  %s881, 128, %s878, %s867
        $region56: #{tpu_custom_call.1} parent=39 // pred_fallthru
          _
      $region40: #{tpu_custom_call.1} parent=5 // pred_fallthru
        _
      %p884 = scmp.le.s32.totalorder 2, %s18
      // Predicated region
      $region57: #{tpu_custom_call.1} parent=5 // pred_check
        %p885 = pneg %p884
      $region58: #{tpu_custom_call.1} parent=5 // pred_check_branch
        %887 = sbr.rel (%p885) target = $region60
      $region59: #{tpu_custom_call.1} parent=5 // pred_region
        %s888 = ssub.s32 %s18, 2
        // Predicated region
        $region61: #{tpu_custom_call.1} parent=59 // pred_check
          %p889 = pneg %p157
        $region62: #{tpu_custom_call.1} parent=59 // pred_check_branch
          %891 = sbr.rel (%p889) target = $region64
        $region63: #{tpu_custom_call.1} parent=59 // pred_region
          %s892 = sand.u32 %s142, 1
          %s893 = scalar_lea.sflag [#allocation4], %s892
          %s894 = sand.u32 %s142, 1
          %s895 = smul.addr %s894, 8
          %s896 = scalar_lea.vmem [#allocation8], %s895
          %897 = dma.done %s893, 128
        $region64: #{tpu_custom_call.1} parent=59 // pred_fallthru
          _
      $region60: #{tpu_custom_call.1} parent=5 // pred_fallthru
        _
    $region6: #{tpu_custom_call.1} parent=1 // loop_footer
      %s22 = sadd.s32 1, %s18
    $region7: #{tpu_custom_call.1} parent=1 // loop_footer_branch
      %17 = sbr.rel target = $region3
    $region8: #{tpu_custom_call.1} parent=1 // loop_exit
      _
    %898 = vsyncpa [#allocation3], 1
    %s899 = scalar_lea.sflag [#allocation3], 1
    %900 = vsyncpa %s899, 1
    %901 = vsyncpa [#allocation6], 1
    %902 = vsyncpa [#allocation4], 1
    %s903 = scalar_lea.sflag [#allocation4], 1
    %904 = vsyncpa %s903, 1

</llo_original>
